<compile_context>
chip_gen: v5e
topology: v5e:2x2
jax: 0.10.0
libtpu: 0.0.40
codegen_flags: <defaults>
</compile_context>

<pallas_src>
import jax
import jax.numpy as jnp
import numpy as np
from jax.experimental import pallas as pl
from jax.experimental.pallas import tpu as pltpu

EPS_POOL = 1e-8   # gv['eps'] (value not given in the source) — clamp on column std
EPS_BN = 1e-5     # torch.nn.BatchNorm1d default eps
EPS_COS = 1e-8    # torch.nn.CosineSimilarity default eps


def _make_kernel(*, dxs, xstride, fdx, fx, n_seq, n_batch, hdim, csize):
    rows = n_seq * n_batch            # flattened (seq, batch) rows
    d_in = 6 * fdx + 6 * fx + hdim    # inputxlen

    def kernel(dx_ref, x_ref, hid_ref, gamma_ref, beta_ref, w_ref, b_ref,
               sel_ref, o_ref, buf):
        # ---- pools(dx, dxs) / pools(x, xstride): write each statistic straight
        #      into its lane slice of the (rows, d_in) input slab (no concat). ----
        def pools_into_slab(src_ref, stride, feat, lane_off):
            xs = [src_ref[g * rows:(g + 1) * rows, :] for g in range(stride)]
            avg = xs[0]
            for a in xs[1:]:
                avg = avg + a
            avg = avg * (1.0 / stride)
            var = (xs[0] - avg) * (xs[0] - avg)
            for a in xs[1:]:
                d = a - avg
                var = var + d * d
            std = jnp.sqrt(var * (1.0 / (stride - 1)))    # torch.std: unbiased
            mx = xs[0]
            mn = xs[0]
            for a in xs[1:]:
                mx = jnp.maximum(mx, a)
                mn = jnp.minimum(mn, a)
            stats = (avg, std, mx, mn, xs[0], xs[-1])
            for k, a in enumerate(stats):
                # Per-column standardization over the rows (unbiased std,
                # clamped at gv['eps']).  Columns of the concatenated pools
                # output are exactly the columns of the individual stats.
                mu = jnp.mean(a, axis=0, keepdims=True)
                c = a - mu
                col_var = jnp.sum(c * c, axis=0, keepdims=True) * (1.0 / (rows - 1))
                sd = jnp.maximum(jnp.sqrt(col_var), EPS_POOL)
                off = lane_off + k * feat
                buf[:, off:off + feat] = c / sd

        pools_into_slab(dx_ref, dxs, fdx, 0)
        pools_into_slab(x_ref, xstride, fx, 6 * fdx)
        buf[:, 6 * fdx + 6 * fx:d_in] = hid_ref[...]

        # ---- BatchNorm1d(track_running_stats=False): batch stats, biased
        #      variance, learned affine.  rsqrt runs on the EUP (free slot). ----
        xin = buf[...]
        mu = jnp.mean(xin, axis=0, keepdims=True)
        ctr = xin - mu
        var = jnp.mean(ctr * ctr, axis=0, keepdims=True)
        xn = ctr * (jax.lax.rsqrt(var + EPS_BN) * gamma_ref[...]) + beta_ref[...]

        # ---- CssModel head: both Linear layers as ONE 2-D MXU matmul against
        #      the pre-concatenated (D, 2C) weight; bias as a (1, 2C) row. ----
        h = jnp.dot(xn, w_ref[...], preferred_element_type=jnp.float32) + b_ref[...]
        h1 = h[:, :csize]
        h2 = h[:, csize:]

        # ---- CosineSimilarity(dim=0): grouped reduction over the seq axis.
        #      Row r of the flattened layout belongs to batch r % n_batch, so the
        #      grouped sum is a tiny (n_batch, rows) selection matmul — no
        #      in-kernel reshape of (S*N, C) -> (S, N, C). ----
        sel = sel_ref[...]
        dot = jnp.dot(sel, h1 * h2, preferred_element_type=jnp.float32)
        s1 = jnp.dot(sel, h1 * h1, preferred_element_type=jnp.float32)
        s2 = jnp.dot(sel, h2 * h2, preferred_element_type=jnp.float32)

        # torch clamp form: dot / max(||h1||*||h2||, eps), fused into one rsqrt.
        o_ref[...] = (dot * jax.lax.rsqrt(jnp.maximum(s1 * s2, EPS_COS * EPS_COS))
                      ).astype(o_ref.dtype)

    return kernel


def seq_extractor_day_forward(dx, x, hidden, gamma, beta, w1, b1, w2, b2, *,
                              dxs, xstride, hiddenstride):
    """Batched forward of SeqExtractorDay over independent instances.

    dx:     (n_inst, dxs * S, N, dxcvnum)
    x:      (n_inst, xstride * S, N, xcvnum)
    hidden: (n_inst, hiddenstride * S, N, inputsize)
    gamma, beta: (inputxlen,)            BatchNorm1d affine parameters
    w1, w2: (crosssize, inputxlen)       Linear weights (torch layout)
    b1, b2: (crosssize,)                 Linear biases
    Returns (n_inst, N, crosssize) float32.
    """
    n_inst, t_dx, n_batch, fdx = dx.shape
    _, t_x, _, fx = x.shape
    _, t_h, _, isize = hidden.shape
    n_seq = t_dx // dxs
    assert t_x // xstride == n_seq and t_h // hiddenstride == n_seq
    rows = n_seq * n_batch
    hdim = isize * hiddenstride
    d_in = 6 * fdx + 6 * fx + hdim
    csize = w1.shape[0]
    f32 = jnp.float32

    # ---- layout-only plumbing, done once in the wrapper (outside the kernel) ----
    dx_flat = dx.astype(f32).reshape(n_inst, dxs * rows, fdx)
    x_flat = x.astype(f32).reshape(n_inst, xstride * rows, fx)
    hid = hidden.astype(f32).reshape(n_inst, hiddenstride, n_seq, n_batch, isize)
    hid_flat = jnp.transpose(hid, (0, 2, 3, 4, 1)).reshape(n_inst, rows, hdim)

    gamma2 = gamma.astype(f32).reshape(1, d_in)
    beta2 = beta.astype(f32).reshape(1, d_in)
    # Both projections as one contraction-major (D, 2C) RHS + (1, 2C) bias row.
    w_cat = jnp.concatenate([w1.T, w2.T], axis=1).astype(f32)
    b_cat = jnp.concatenate([b1, b2]).astype(f32).reshape(1, 2 * csize)
    # Selection matrix for the grouped seq reduction: sel[n, r] = (r % N == n).
    sel = (jnp.arange(rows)[None, :] % n_batch ==
           jnp.arange(n_batch)[:, None]).astype(f32)

    kernel = _make_kernel(dxs=dxs, xstride=xstride, fdx=fdx, fx=fx,
                          n_seq=n_seq, n_batch=n_batch, hdim=hdim, csize=csize)

    # NOTE: output last dim (crosssize) < 128 lanes -> masked stores; padding to a
    # lane-dense slab only matters at much larger scale than this module uses.
    return pl.pallas_call(
        kernel,
        out_shape=jax.ShapeDtypeStruct((n_inst, n_batch, csize), f32),
        grid=(n_inst,),
        in_specs=[
            pl.BlockSpec((None, dxs * rows, fdx), lambda i: (i, 0, 0)),
            pl.BlockSpec((None, xstride * rows, fx), lambda i: (i, 0, 0)),
            pl.BlockSpec((None, rows, hdim), lambda i: (i, 0, 0)),
            pl.BlockSpec((1, d_in), lambda i: (0, 0)),
            pl.BlockSpec((1, d_in), lambda i: (0, 0)),
            pl.BlockSpec((d_in, 2 * csize), lambda i: (0, 0)),
            pl.BlockSpec((1, 2 * csize), lambda i: (0, 0)),
            pl.BlockSpec((n_batch, rows), lambda i: (0, 0)),
        ],
        out_specs=pl.BlockSpec((None, n_batch, csize), lambda i: (i, 0, 0)),
        scratch_shapes=[pltpu.VMEM((rows, d_in), f32)],
        compiler_params=pltpu.CompilerParams(
            dimension_semantics=("parallel",)),
    )(dx_flat, x_flat, hid_flat, gamma2, beta2, w_cat, b_cat, sel)


# ----------------------------- pure-JAX reference -----------------------------
def _pools_ref(x, stride, eps):
    xg = x.reshape(stride, -1, x.shape[1], x.shape[2]).astype(jnp.float32)
    avg = jnp.mean(xg, axis=0)
    std = jnp.std(xg, axis=0, ddof=1)
    maxv = jnp.max(xg, axis=0)
    minv = jnp.min(xg, axis=0)
    out = jnp.concatenate([avg, std, maxv, minv, xg[0], xg[-1]], axis=2)
    shp = out.shape
    o2 = out.reshape(-1, shp[-1])
    o2 = (o2 - jnp.mean(o2, axis=0)) / jnp.maximum(jnp.std(o2, axis=0, ddof=1), eps)
    return o2.reshape(shp)


def _forward_ref_single(dx, x, hidden, gamma, beta, w1, b1, w2, b2, *,
                        dxs, xstride, hiddenstride):
    dxp = _pools_ref(dx, dxs, EPS_POOL)
    xp = _pools_ref(x, xstride, EPS_POOL)
    t_h, n_batch, isize = hidden.shape
    n_seq = t_h // hiddenstride
    hid = hidden.reshape(hiddenstride, n_seq, n_batch, isize)
    hid = jnp.transpose(hid, (1, 2, 3, 0)).reshape(n_seq, n_batch, isize * hiddenstride)
    inputx = jnp.concatenate([dxp, xp, hid.astype(jnp.float32)], axis=2)
    d_in = inputx.shape[-1]
    flat = inputx.reshape(-1, d_in)
    mu = jnp.mean(flat, axis=0)
    var = jnp.var(flat, axis=0)                       # biased, as in BatchNorm
    flat = (flat - mu) / jnp.sqrt(var + EPS_BN) * gamma + beta
    inputx = flat.reshape(inputx.shape)
    hp = jax.lax.Precision.HIGHEST
    h1 = jnp.einsum('snd,cd->snc', inputx, w1, precision=hp) + b1
    h2 = jnp.einsum('snd,cd->snc', inputx, w2, precision=hp) + b2
    dot = jnp.sum(h1 * h2, axis=0)
    n1 = jnp.sqrt(jnp.sum(h1 * h1, axis=0))
    n2 = jnp.sqrt(jnp.sum(h2 * h2, axis=0))
    return dot / jnp.maximum(n1 * n2, EPS_COS)


if __name__ == "__main__":
    # Small shapes consistent with the module.
    DXCV, XCV, ISIZE, CSIZE = 4, 4, 8, 16
    DXS, XSTRIDE, HSTRIDE = 2, 2, 2
    SEQ, NBATCH, NINST = 8, 2, 3
    D_IN = 6 * DXCV + 6 * XCV + ISIZE * HSTRIDE      # inputxlen = 64

    key = jax.random.PRNGKey(0)
    keys = jax.random.split(key, 9)
    dx = jax.random.normal(keys[0], (NINST, DXS * SEQ, NBATCH, DXCV), jnp.float32)
    x = jax.random.normal(keys[1], (NINST, XSTRIDE * SEQ, NBATCH, XCV), jnp.float32)
    hidden = jax.random.normal(keys[2], (NINST, HSTRIDE * SEQ, NBATCH, ISIZE), jnp.float32)

    # BatchNorm affine (default init is gamma=1, beta=0; perturb to exercise it).
    gamma = 1.0 + 0.1 * jax.random.normal(keys[3], (D_IN,), jnp.float32)
    beta = 0.1 * jax.random.normal(keys[4], (D_IN,), jnp.float32)

    # PyTorch nn.Linear init: U(-1/sqrt(fan_in), 1/sqrt(fan_in)).
    bound = 1.0 / np.sqrt(D_IN)
    w1 = jax.random.uniform(keys[5], (CSIZE, D_IN), jnp.float32, -bound, bound)
    b1 = jax.random.uniform(keys[6], (CSIZE,), jnp.float32, -bound, bound)
    w2 = jax.random.uniform(keys[7], (CSIZE, D_IN), jnp.float32, -bound, bound)
    b2 = jax.random.uniform(keys[8], (CSIZE,), jnp.float32, -bound, bound)

    out = seq_extractor_day_forward(dx, x, hidden, gamma, beta, w1, b1, w2, b2,
                                    dxs=DXS, xstride=XSTRIDE, hiddenstride=HSTRIDE)
    out = jax.block_until_ready(out)
    assert out.shape == (NINST, NBATCH, CSIZE)

    ref_fn = jax.vmap(lambda d, xv, h: _forward_ref_single(
        d, xv, h, gamma, beta, w1, b1, w2, b2,
        dxs=DXS, xstride=XSTRIDE, hiddenstride=HSTRIDE))
    ref = jax.block_until_ready(ref_fn(dx, x, hidden))

    np.testing.assert_allclose(np.asarray(out), np.asarray(ref), rtol=1e-4, atol=1e-5)
    print("KERNEL_OK")
</pallas_src>

<mosaic_0001>
module attributes {stable_mosaic.version = 11 : i64} {
  func.func @kernel(%arg0: i32, %arg1: memref<1x32x4xf32, #tpu.memory_space<vmem>>, %arg2: memref<1x32x4xf32, #tpu.memory_space<vmem>>, %arg3: memref<1x16x16xf32, #tpu.memory_space<vmem>>, %arg4: memref<1x64xf32, #tpu.memory_space<vmem>>, %arg5: memref<1x64xf32, #tpu.memory_space<vmem>>, %arg6: memref<64x32xf32, #tpu.memory_space<vmem>>, %arg7: memref<1x32xf32, #tpu.memory_space<vmem>>, %arg8: memref<2x16xf32, #tpu.memory_space<vmem>>, %arg9: memref<1x2x16xf32, #tpu.memory_space<vmem>>, %arg10: memref<16x64xf32, #tpu.memory_space<vmem>>) attributes {dimension_semantics = [#tpu.dimension_semantics<parallel>], iteration_bounds = array<i64: 3>, scalar_prefetch = 0 : i64, scratch_operands = 1 : i64, tpu.core_type = #tpu.core_type<tc>, window_params = [{transform_indices = @transform_0, window_bounds = array<i64: 1, 32, 4>}, {transform_indices = @transform_1, window_bounds = array<i64: 1, 32, 4>}, {transform_indices = @transform_2, window_bounds = array<i64: 1, 16, 16>}, {pipeline_mode = #tpu.pipeline_mode<synchronous>, transform_indices = @transform_3, window_bounds = array<i64: 1, 64>}, {pipeline_mode = #tpu.pipeline_mode<synchronous>, transform_indices = @transform_4, window_bounds = array<i64: 1, 64>}, {pipeline_mode = #tpu.pipeline_mode<synchronous>, transform_indices = @transform_5, window_bounds = array<i64: 64, 32>}, {pipeline_mode = #tpu.pipeline_mode<synchronous>, transform_indices = @transform_6, window_bounds = array<i64: 1, 32>}, {pipeline_mode = #tpu.pipeline_mode<synchronous>, transform_indices = @transform_7, window_bounds = array<i64: 2, 16>}, {transform_indices = @transform_8, window_bounds = array<i64: 1, 2, 16>}]} {
    %c0 = arith.constant 0 : index
    %c0_0 = arith.constant 0 : index
    %c0_1 = arith.constant 0 : index
    %0 = vector.load %arg1[%c0, %c0_0, %c0_1] : memref<1x32x4xf32, #tpu.memory_space<vmem>>, vector<1x16x4xf32>
    %1 = vector.shape_cast %0 : vector<1x16x4xf32> to vector<16x4xf32>
    %c0_2 = arith.constant 0 : index
    %c16 = arith.constant 16 : index
    %c0_3 = arith.constant 0 : index
    %2 = vector.load %arg1[%c0_2, %c16, %c0_3] : memref<1x32x4xf32, #tpu.memory_space<vmem>>, vector<1x16x4xf32>
    %3 = vector.shape_cast %2 : vector<1x16x4xf32> to vector<16x4xf32>
    %4 = arith.addf %1, %3 : vector<16x4xf32>
    %cst = arith.constant 5.000000e-01 : f32
    %5 = vector.broadcast %cst : f32 to vector<16x4xf32>
    %6 = arith.mulf %4, %5 : vector<16x4xf32>
    %7 = arith.subf %1, %6 : vector<16x4xf32>
    %8 = arith.subf %1, %6 : vector<16x4xf32>
    %9 = arith.mulf %7, %8 : vector<16x4xf32>
    %10 = arith.subf %3, %6 : vector<16x4xf32>
    %11 = arith.mulf %10, %10 : vector<16x4xf32>
    %12 = arith.addf %9, %11 : vector<16x4xf32>
    %cst_4 = arith.constant 1.000000e+00 : f32
    %13 = vector.broadcast %cst_4 : f32 to vector<16x4xf32>
    %14 = arith.mulf %12, %13 : vector<16x4xf32>
    %15 = math.sqrt %14 : vector<16x4xf32>
    %16 = arith.maximumf %1, %3 : vector<16x4xf32>
    %17 = arith.minimumf %1, %3 : vector<16x4xf32>
    %cst_5 = arith.constant dense<0.000000e+00> : vector<4xf32>
    %18 = vector.multi_reduction <add>, %6, %cst_5 [0] : vector<16x4xf32> to vector<4xf32>
    %19 = vector.shape_cast %18 : vector<4xf32> to vector<1x4xf32>
    %cst_6 = arith.constant 1.600000e+01 : f32
    %20 = vector.broadcast %cst_6 : f32 to vector<1x4xf32>
    %21 = arith.divf %19, %20 : vector<1x4xf32>
    %22 = vector.broadcast %21 : vector<1x4xf32> to vector<16x4xf32>
    %23 = arith.subf %6, %22 : vector<16x4xf32>
    %24 = arith.mulf %23, %23 : vector<16x4xf32>
    %cst_7 = arith.constant dense<0.000000e+00> : vector<4xf32>
    %25 = vector.multi_reduction <add>, %24, %cst_7 [0] : vector<16x4xf32> to vector<4xf32>
    %26 = vector.shape_cast %25 : vector<4xf32> to vector<1x4xf32>
    %cst_8 = arith.constant 0.0666666701 : f32
    %27 = vector.broadcast %cst_8 : f32 to vector<1x4xf32>
    %28 = arith.mulf %26, %27 : vector<1x4xf32>
    %29 = math.sqrt %28 : vector<1x4xf32>
    %cst_9 = arith.constant 9.99999993E-9 : f32
    %30 = vector.broadcast %cst_9 : f32 to vector<1x4xf32>
    %31 = arith.maximumf %29, %30 : vector<1x4xf32>
    %32 = vector.broadcast %31 : vector<1x4xf32> to vector<16x4xf32>
    %33 = arith.divf %23, %32 : vector<16x4xf32>
    %c0_10 = arith.constant 0 : index
    %c0_11 = arith.constant 0 : index
    %34 = vector.load %arg10[%c0_10, %c0_11] : memref<16x64xf32, #tpu.memory_space<vmem>>, vector<16x4xf32>
    tpu.vector_store %arg10[%c0_10, %c0_11], %33 {strides = array<i32>} : memref<16x64xf32, #tpu.memory_space<vmem>>, vector<16x4xf32>,
    %cst_12 = arith.constant dense<0.000000e+00> : vector<4xf32>
    %35 = vector.multi_reduction <add>, %15, %cst_12 [0] : vector<16x4xf32> to vector<4xf32>
    %36 = vector.shape_cast %35 : vector<4xf32> to vector<1x4xf32>
    %cst_13 = arith.constant 1.600000e+01 : f32
    %37 = vector.broadcast %cst_13 : f32 to vector<1x4xf32>
    %38 = arith.divf %36, %37 : vector<1x4xf32>
    %39 = vector.broadcast %38 : vector<1x4xf32> to vector<16x4xf32>
    %40 = arith.subf %15, %39 : vector<16x4xf32>
    %41 = arith.mulf %40, %40 : vector<16x4xf32>
    %cst_14 = arith.constant dense<0.000000e+00> : vector<4xf32>
    %42 = vector.multi_reduction <add>, %41, %cst_14 [0] : vector<16x4xf32> to vector<4xf32>
    %43 = vector.shape_cast %42 : vector<4xf32> to vector<1x4xf32>
    %cst_15 = arith.constant 0.0666666701 : f32
    %44 = vector.broadcast %cst_15 : f32 to vector<1x4xf32>
    %45 = arith.mulf %43, %44 : vector<1x4xf32>
    %46 = math.sqrt %45 : vector<1x4xf32>
    %cst_16 = arith.constant 9.99999993E-9 : f32
    %47 = vector.broadcast %cst_16 : f32 to vector<1x4xf32>
    %48 = arith.maximumf %46, %47 : vector<1x4xf32>
    %49 = vector.broadcast %48 : vector<1x4xf32> to vector<16x4xf32>
    %50 = arith.divf %40, %49 : vector<16x4xf32>
    %c0_17 = arith.constant 0 : index
    %c4 = arith.constant 4 : index
    %51 = vector.load %arg10[%c0_17, %c4] : memref<16x64xf32, #tpu.memory_space<vmem>>, vector<16x4xf32>
    tpu.vector_store %arg10[%c0_17, %c4], %50 {strides = array<i32>} : memref<16x64xf32, #tpu.memory_space<vmem>>, vector<16x4xf32>,
    %cst_18 = arith.constant dense<0.000000e+00> : vector<4xf32>
    %52 = vector.multi_reduction <add>, %16, %cst_18 [0] : vector<16x4xf32> to vector<4xf32>
    %53 = vector.shape_cast %52 : vector<4xf32> to vector<1x4xf32>
    %cst_19 = arith.constant 1.600000e+01 : f32
    %54 = vector.broadcast %cst_19 : f32 to vector<1x4xf32>
    %55 = arith.divf %53, %54 : vector<1x4xf32>
    %56 = vector.broadcast %55 : vector<1x4xf32> to vector<16x4xf32>
    %57 = arith.subf %16, %56 : vector<16x4xf32>
    %58 = arith.mulf %57, %57 : vector<16x4xf32>
    %cst_20 = arith.constant dense<0.000000e+00> : vector<4xf32>
    %59 = vector.multi_reduction <add>, %58, %cst_20 [0] : vector<16x4xf32> to vector<4xf32>
    %60 = vector.shape_cast %59 : vector<4xf32> to vector<1x4xf32>
    %cst_21 = arith.constant 0.0666666701 : f32
    %61 = vector.broadcast %cst_21 : f32 to vector<1x4xf32>
    %62 = arith.mulf %60, %61 : vector<1x4xf32>
    %63 = math.sqrt %62 : vector<1x4xf32>
    %cst_22 = arith.constant 9.99999993E-9 : f32
    %64 = vector.broadcast %cst_22 : f32 to vector<1x4xf32>
    %65 = arith.maximumf %63, %64 : vector<1x4xf32>
    %66 = vector.broadcast %65 : vector<1x4xf32> to vector<16x4xf32>
    %67 = arith.divf %57, %66 : vector<16x4xf32>
    %c0_23 = arith.constant 0 : index
    %c8 = arith.constant 8 : index
    %68 = vector.load %arg10[%c0_23, %c8] : memref<16x64xf32, #tpu.memory_space<vmem>>, vector<16x4xf32>
    tpu.vector_store %arg10[%c0_23, %c8], %67 {strides = array<i32>} : memref<16x64xf32, #tpu.memory_space<vmem>>, vector<16x4xf32>,
    %cst_24 = arith.constant dense<0.000000e+00> : vector<4xf32>
    %69 = vector.multi_reduction <add>, %17, %cst_24 [0] : vector<16x4xf32> to vector<4xf32>
    %70 = vector.shape_cast %69 : vector<4xf32> to vector<1x4xf32>
    %cst_25 = arith.constant 1.600000e+01 : f32
    %71 = vector.broadcast %cst_25 : f32 to vector<1x4xf32>
    %72 = arith.divf %70, %71 : vector<1x4xf32>
    %73 = vector.broadcast %72 : vector<1x4xf32> to vector<16x4xf32>
    %74 = arith.subf %17, %73 : vector<16x4xf32>
    %75 = arith.mulf %74, %74 : vector<16x4xf32>
    %cst_26 = arith.constant dense<0.000000e+00> : vector<4xf32>
    %76 = vector.multi_reduction <add>, %75, %cst_26 [0] : vector<16x4xf32> to vector<4xf32>
    %77 = vector.shape_cast %76 : vector<4xf32> to vector<1x4xf32>
    %cst_27 = arith.constant 0.0666666701 : f32
    %78 = vector.broadcast %cst_27 : f32 to vector<1x4xf32>
    %79 = arith.mulf %77, %78 : vector<1x4xf32>
    %80 = math.sqrt %79 : vector<1x4xf32>
    %cst_28 = arith.constant 9.99999993E-9 : f32
    %81 = vector.broadcast %cst_28 : f32 to vector<1x4xf32>
    %82 = arith.maximumf %80, %81 : vector<1x4xf32>
    %83 = vector.broadcast %82 : vector<1x4xf32> to vector<16x4xf32>
    %84 = arith.divf %74, %83 : vector<16x4xf32>
    %c0_29 = arith.constant 0 : index
    %c12 = arith.constant 12 : index
    %85 = vector.load %arg10[%c0_29, %c12] : memref<16x64xf32, #tpu.memory_space<vmem>>, vector<16x4xf32>
    tpu.vector_store %arg10[%c0_29, %c12], %84 {strides = array<i32>} : memref<16x64xf32, #tpu.memory_space<vmem>>, vector<16x4xf32>,
    %cst_30 = arith.constant dense<0.000000e+00> : vector<4xf32>
    %86 = vector.multi_reduction <add>, %1, %cst_30 [0] : vector<16x4xf32> to vector<4xf32>
    %87 = vector.shape_cast %86 : vector<4xf32> to vector<1x4xf32>
    %cst_31 = arith.constant 1.600000e+01 : f32
    %88 = vector.broadcast %cst_31 : f32 to vector<1x4xf32>
    %89 = arith.divf %87, %88 : vector<1x4xf32>
    %90 = vector.broadcast %89 : vector<1x4xf32> to vector<16x4xf32>
    %91 = arith.subf %1, %90 : vector<16x4xf32>
    %92 = arith.mulf %91, %91 : vector<16x4xf32>
    %cst_32 = arith.constant dense<0.000000e+00> : vector<4xf32>
    %93 = vector.multi_reduction <add>, %92, %cst_32 [0] : vector<16x4xf32> to vector<4xf32>
    %94 = vector.shape_cast %93 : vector<4xf32> to vector<1x4xf32>
    %cst_33 = arith.constant 0.0666666701 : f32
    %95 = vector.broadcast %cst_33 : f32 to vector<1x4xf32>
    %96 = arith.mulf %94, %95 : vector<1x4xf32>
    %97 = math.sqrt %96 : vector<1x4xf32>
    %cst_34 = arith.constant 9.99999993E-9 : f32
    %98 = vector.broadcast %cst_34 : f32 to vector<1x4xf32>
    %99 = arith.maximumf %97, %98 : vector<1x4xf32>
    %100 = vector.broadcast %99 : vector<1x4xf32> to vector<16x4xf32>
    %101 = arith.divf %91, %100 : vector<16x4xf32>
    %c0_35 = arith.constant 0 : index
    %c16_36 = arith.constant 16 : index
    %102 = vector.load %arg10[%c0_35, %c16_36] : memref<16x64xf32, #tpu.memory_space<vmem>>, vector<16x4xf32>
    tpu.vector_store %arg10[%c0_35, %c16_36], %101 {strides = array<i32>} : memref<16x64xf32, #tpu.memory_space<vmem>>, vector<16x4xf32>,
    %cst_37 = arith.constant dense<0.000000e+00> : vector<4xf32>
    %103 = vector.multi_reduction <add>, %3, %cst_37 [0] : vector<16x4xf32> to vector<4xf32>
    %104 = vector.shape_cast %103 : vector<4xf32> to vector<1x4xf32>
    %cst_38 = arith.constant 1.600000e+01 : f32
    %105 = vector.broadcast %cst_38 : f32 to vector<1x4xf32>
    %106 = arith.divf %104, %105 : vector<1x4xf32>
    %107 = vector.broadcast %106 : vector<1x4xf32> to vector<16x4xf32>
    %108 = arith.subf %3, %107 : vector<16x4xf32>
    %109 = arith.mulf %108, %108 : vector<16x4xf32>
    %cst_39 = arith.constant dense<0.000000e+00> : vector<4xf32>
    %110 = vector.multi_reduction <add>, %109, %cst_39 [0] : vector<16x4xf32> to vector<4xf32>
    %111 = vector.shape_cast %110 : vector<4xf32> to vector<1x4xf32>
    %cst_40 = arith.constant 0.0666666701 : f32
    %112 = vector.broadcast %cst_40 : f32 to vector<1x4xf32>
    %113 = arith.mulf %111, %112 : vector<1x4xf32>
    %114 = math.sqrt %113 : vector<1x4xf32>
    %cst_41 = arith.constant 9.99999993E-9 : f32
    %115 = vector.broadcast %cst_41 : f32 to vector<1x4xf32>
    %116 = arith.maximumf %114, %115 : vector<1x4xf32>
    %117 = vector.broadcast %116 : vector<1x4xf32> to vector<16x4xf32>
    %118 = arith.divf %108, %117 : vector<16x4xf32>
    %c0_42 = arith.constant 0 : index
    %c20 = arith.constant 20 : index
    %119 = vector.load %arg10[%c0_42, %c20] : memref<16x64xf32, #tpu.memory_space<vmem>>, vector<16x4xf32>
    tpu.vector_store %arg10[%c0_42, %c20], %118 {strides = array<i32>} : memref<16x64xf32, #tpu.memory_space<vmem>>, vector<16x4xf32>,
    %c0_43 = arith.constant 0 : index
    %c0_44 = arith.constant 0 : index
    %c0_45 = arith.constant 0 : index
    %120 = vector.load %arg2[%c0_43, %c0_44, %c0_45] : memref<1x32x4xf32, #tpu.memory_space<vmem>>, vector<1x16x4xf32>
    %121 = vector.shape_cast %120 : vector<1x16x4xf32> to vector<16x4xf32>
    %c0_46 = arith.constant 0 : index
    %c16_47 = arith.constant 16 : index
    %c0_48 = arith.constant 0 : index
    %122 = vector.load %arg2[%c0_46, %c16_47, %c0_48] : memref<1x32x4xf32, #tpu.memory_space<vmem>>, vector<1x16x4xf32>
    %123 = vector.shape_cast %122 : vector<1x16x4xf32> to vector<16x4xf32>
    %124 = arith.addf %121, %123 : vector<16x4xf32>
    %cst_49 = arith.constant 5.000000e-01 : f32
    %125 = vector.broadcast %cst_49 : f32 to vector<16x4xf32>
    %126 = arith.mulf %124, %125 : vector<16x4xf32>
    %127 = arith.subf %121, %126 : vector<16x4xf32>
    %128 = arith.subf %121, %126 : vector<16x4xf32>
    %129 = arith.mulf %127, %128 : vector<16x4xf32>
    %130 = arith.subf %123, %126 : vector<16x4xf32>
    %131 = arith.mulf %130, %130 : vector<16x4xf32>
    %132 = arith.addf %129, %131 : vector<16x4xf32>
    %cst_50 = arith.constant 1.000000e+00 : f32
    %133 = vector.broadcast %cst_50 : f32 to vector<16x4xf32>
    %134 = arith.mulf %132, %133 : vector<16x4xf32>
    %135 = math.sqrt %134 : vector<16x4xf32>
    %136 = arith.maximumf %121, %123 : vector<16x4xf32>
    %137 = arith.minimumf %121, %123 : vector<16x4xf32>
    %cst_51 = arith.constant dense<0.000000e+00> : vector<4xf32>
    %138 = vector.multi_reduction <add>, %126, %cst_51 [0] : vector<16x4xf32> to vector<4xf32>
    %139 = vector.shape_cast %138 : vector<4xf32> to vector<1x4xf32>
    %cst_52 = arith.constant 1.600000e+01 : f32
    %140 = vector.broadcast %cst_52 : f32 to vector<1x4xf32>
    %141 = arith.divf %139, %140 : vector<1x4xf32>
    %142 = vector.broadcast %141 : vector<1x4xf32> to vector<16x4xf32>
    %143 = arith.subf %126, %142 : vector<16x4xf32>
    %144 = arith.mulf %143, %143 : vector<16x4xf32>
    %cst_53 = arith.constant dense<0.000000e+00> : vector<4xf32>
    %145 = vector.multi_reduction <add>, %144, %cst_53 [0] : vector<16x4xf32> to vector<4xf32>
    %146 = vector.shape_cast %145 : vector<4xf32> to vector<1x4xf32>
    %cst_54 = arith.constant 0.0666666701 : f32
    %147 = vector.broadcast %cst_54 : f32 to vector<1x4xf32>
    %148 = arith.mulf %146, %147 : vector<1x4xf32>
    %149 = math.sqrt %148 : vector<1x4xf32>
    %cst_55 = arith.constant 9.99999993E-9 : f32
    %150 = vector.broadcast %cst_55 : f32 to vector<1x4xf32>
    %151 = arith.maximumf %149, %150 : vector<1x4xf32>
    %152 = vector.broadcast %151 : vector<1x4xf32> to vector<16x4xf32>
    %153 = arith.divf %143, %152 : vector<16x4xf32>
    %c0_56 = arith.constant 0 : index
    %c24 = arith.constant 24 : index
    %154 = vector.load %arg10[%c0_56, %c24] : memref<16x64xf32, #tpu.memory_space<vmem>>, vector<16x4xf32>
    tpu.vector_store %arg10[%c0_56, %c24], %153 {strides = array<i32>} : memref<16x64xf32, #tpu.memory_space<vmem>>, vector<16x4xf32>,
    %cst_57 = arith.constant dense<0.000000e+00> : vector<4xf32>
    %155 = vector.multi_reduction <add>, %135, %cst_57 [0] : vector<16x4xf32> to vector<4xf32>
    %156 = vector.shape_cast %155 : vector<4xf32> to vector<1x4xf32>
    %cst_58 = arith.constant 1.600000e+01 : f32
    %157 = vector.broadcast %cst_58 : f32 to vector<1x4xf32>
    %158 = arith.divf %156, %157 : vector<1x4xf32>
    %159 = vector.broadcast %158 : vector<1x4xf32> to vector<16x4xf32>
    %160 = arith.subf %135, %159 : vector<16x4xf32>
    %161 = arith.mulf %160, %160 : vector<16x4xf32>
    %cst_59 = arith.constant dense<0.000000e+00> : vector<4xf32>
    %162 = vector.multi_reduction <add>, %161, %cst_59 [0] : vector<16x4xf32> to vector<4xf32>
    %163 = vector.shape_cast %162 : vector<4xf32> to vector<1x4xf32>
    %cst_60 = arith.constant 0.0666666701 : f32
    %164 = vector.broadcast %cst_60 : f32 to vector<1x4xf32>
    %165 = arith.mulf %163, %164 : vector<1x4xf32>
    %166 = math.sqrt %165 : vector<1x4xf32>
    %cst_61 = arith.constant 9.99999993E-9 : f32
    %167 = vector.broadcast %cst_61 : f32 to vector<1x4xf32>
    %168 = arith.maximumf %166, %167 : vector<1x4xf32>
    %169 = vector.broadcast %168 : vector<1x4xf32> to vector<16x4xf32>
    %170 = arith.divf %160, %169 : vector<16x4xf32>
    %c0_62 = arith.constant 0 : index
    %c28 = arith.constant 28 : index
    %171 = vector.load %arg10[%c0_62, %c28] : memref<16x64xf32, #tpu.memory_space<vmem>>, vector<16x4xf32>
    tpu.vector_store %arg10[%c0_62, %c28], %170 {strides = array<i32>} : memref<16x64xf32, #tpu.memory_space<vmem>>, vector<16x4xf32>,
    %cst_63 = arith.constant dense<0.000000e+00> : vector<4xf32>
    %172 = vector.multi_reduction <add>, %136, %cst_63 [0] : vector<16x4xf32> to vector<4xf32>
    %173 = vector.shape_cast %172 : vector<4xf32> to vector<1x4xf32>
    %cst_64 = arith.constant 1.600000e+01 : f32
    %174 = vector.broadcast %cst_64 : f32 to vector<1x4xf32>
    %175 = arith.divf %173, %174 : vector<1x4xf32>
    %176 = vector.broadcast %175 : vector<1x4xf32> to vector<16x4xf32>
    %177 = arith.subf %136, %176 : vector<16x4xf32>
    %178 = arith.mulf %177, %177 : vector<16x4xf32>
    %cst_65 = arith.constant dense<0.000000e+00> : vector<4xf32>
    %179 = vector.multi_reduction <add>, %178, %cst_65 [0] : vector<16x4xf32> to vector<4xf32>
    %180 = vector.shape_cast %179 : vector<4xf32> to vector<1x4xf32>
    %cst_66 = arith.constant 0.0666666701 : f32
    %181 = vector.broadcast %cst_66 : f32 to vector<1x4xf32>
    %182 = arith.mulf %180, %181 : vector<1x4xf32>
    %183 = math.sqrt %182 : vector<1x4xf32>
    %cst_67 = arith.constant 9.99999993E-9 : f32
    %184 = vector.broadcast %cst_67 : f32 to vector<1x4xf32>
    %185 = arith.maximumf %183, %184 : vector<1x4xf32>
    %186 = vector.broadcast %185 : vector<1x4xf32> to vector<16x4xf32>
    %187 = arith.divf %177, %186 : vector<16x4xf32>
    %c0_68 = arith.constant 0 : index
    %c32 = arith.constant 32 : index
    %188 = vector.load %arg10[%c0_68, %c32] : memref<16x64xf32, #tpu.memory_space<vmem>>, vector<16x4xf32>
    tpu.vector_store %arg10[%c0_68, %c32], %187 {strides = array<i32>} : memref<16x64xf32, #tpu.memory_space<vmem>>, vector<16x4xf32>,
    %cst_69 = arith.constant dense<0.000000e+00> : vector<4xf32>
    %189 = vector.multi_reduction <add>, %137, %cst_69 [0] : vector<16x4xf32> to vector<4xf32>
    %190 = vector.shape_cast %189 : vector<4xf32> to vector<1x4xf32>
    %cst_70 = arith.constant 1.600000e+01 : f32
    %191 = vector.broadcast %cst_70 : f32 to vector<1x4xf32>
    %192 = arith.divf %190, %191 : vector<1x4xf32>
    %193 = vector.broadcast %192 : vector<1x4xf32> to vector<16x4xf32>
    %194 = arith.subf %137, %193 : vector<16x4xf32>
    %195 = arith.mulf %194, %194 : vector<16x4xf32>
    %cst_71 = arith.constant dense<0.000000e+00> : vector<4xf32>
    %196 = vector.multi_reduction <add>, %195, %cst_71 [0] : vector<16x4xf32> to vector<4xf32>
    %197 = vector.shape_cast %196 : vector<4xf32> to vector<1x4xf32>
    %cst_72 = arith.constant 0.0666666701 : f32
    %198 = vector.broadcast %cst_72 : f32 to vector<1x4xf32>
    %199 = arith.mulf %197, %198 : vector<1x4xf32>
    %200 = math.sqrt %199 : vector<1x4xf32>
    %cst_73 = arith.constant 9.99999993E-9 : f32
    %201 = vector.broadcast %cst_73 : f32 to vector<1x4xf32>
    %202 = arith.maximumf %200, %201 : vector<1x4xf32>
    %203 = vector.broadcast %202 : vector<1x4xf32> to vector<16x4xf32>
    %204 = arith.divf %194, %203 : vector<16x4xf32>
    %c0_74 = arith.constant 0 : index
    %c36 = arith.constant 36 : index
    %205 = vector.load %arg10[%c0_74, %c36] : memref<16x64xf32, #tpu.memory_space<vmem>>, vector<16x4xf32>
    tpu.vector_store %arg10[%c0_74, %c36], %204 {strides = array<i32>} : memref<16x64xf32, #tpu.memory_space<vmem>>, vector<16x4xf32>,
    %cst_75 = arith.constant dense<0.000000e+00> : vector<4xf32>
    %206 = vector.multi_reduction <add>, %121, %cst_75 [0] : vector<16x4xf32> to vector<4xf32>
    %207 = vector.shape_cast %206 : vector<4xf32> to vector<1x4xf32>
    %cst_76 = arith.constant 1.600000e+01 : f32
    %208 = vector.broadcast %cst_76 : f32 to vector<1x4xf32>
    %209 = arith.divf %207, %208 : vector<1x4xf32>
    %210 = vector.broadcast %209 : vector<1x4xf32> to vector<16x4xf32>
    %211 = arith.subf %121, %210 : vector<16x4xf32>
    %212 = arith.mulf %211, %211 : vector<16x4xf32>
    %cst_77 = arith.constant dense<0.000000e+00> : vector<4xf32>
    %213 = vector.multi_reduction <add>, %212, %cst_77 [0] : vector<16x4xf32> to vector<4xf32>
    %214 = vector.shape_cast %213 : vector<4xf32> to vector<1x4xf32>
    %cst_78 = arith.constant 0.0666666701 : f32
    %215 = vector.broadcast %cst_78 : f32 to vector<1x4xf32>
    %216 = arith.mulf %214, %215 : vector<1x4xf32>
    %217 = math.sqrt %216 : vector<1x4xf32>
    %cst_79 = arith.constant 9.99999993E-9 : f32
    %218 = vector.broadcast %cst_79 : f32 to vector<1x4xf32>
    %219 = arith.maximumf %217, %218 : vector<1x4xf32>
    %220 = vector.broadcast %219 : vector<1x4xf32> to vector<16x4xf32>
    %221 = arith.divf %211, %220 : vector<16x4xf32>
    %c0_80 = arith.constant 0 : index
    %c40 = arith.constant 40 : index
    %222 = vector.load %arg10[%c0_80, %c40] : memref<16x64xf32, #tpu.memory_space<vmem>>, vector<16x4xf32>
    tpu.vector_store %arg10[%c0_80, %c40], %221 {strides = array<i32>} : memref<16x64xf32, #tpu.memory_space<vmem>>, vector<16x4xf32>,
    %cst_81 = arith.constant dense<0.000000e+00> : vector<4xf32>
    %223 = vector.multi_reduction <add>, %123, %cst_81 [0] : vector<16x4xf32> to vector<4xf32>
    %224 = vector.shape_cast %223 : vector<4xf32> to vector<1x4xf32>
    %cst_82 = arith.constant 1.600000e+01 : f32
    %225 = vector.broadcast %cst_82 : f32 to vector<1x4xf32>
    %226 = arith.divf %224, %225 : vector<1x4xf32>
    %227 = vector.broadcast %226 : vector<1x4xf32> to vector<16x4xf32>
    %228 = arith.subf %123, %227 : vector<16x4xf32>
    %229 = arith.mulf %228, %228 : vector<16x4xf32>
    %cst_83 = arith.constant dense<0.000000e+00> : vector<4xf32>
    %230 = vector.multi_reduction <add>, %229, %cst_83 [0] : vector<16x4xf32> to vector<4xf32>
    %231 = vector.shape_cast %230 : vector<4xf32> to vector<1x4xf32>
    %cst_84 = arith.constant 0.0666666701 : f32
    %232 = vector.broadcast %cst_84 : f32 to vector<1x4xf32>
    %233 = arith.mulf %231, %232 : vector<1x4xf32>
    %234 = math.sqrt %233 : vector<1x4xf32>
    %cst_85 = arith.constant 9.99999993E-9 : f32
    %235 = vector.broadcast %cst_85 : f32 to vector<1x4xf32>
    %236 = arith.maximumf %234, %235 : vector<1x4xf32>
    %237 = vector.broadcast %236 : vector<1x4xf32> to vector<16x4xf32>
    %238 = arith.divf %228, %237 : vector<16x4xf32>
    %c0_86 = arith.constant 0 : index
    %c44 = arith.constant 44 : index
    %239 = vector.load %arg10[%c0_86, %c44] : memref<16x64xf32, #tpu.memory_space<vmem>>, vector<16x4xf32>
    tpu.vector_store %arg10[%c0_86, %c44], %238 {strides = array<i32>} : memref<16x64xf32, #tpu.memory_space<vmem>>, vector<16x4xf32>,
    %c0_87 = arith.constant 0 : index
    %c0_88 = arith.constant 0 : index
    %c0_89 = arith.constant 0 : index
    %240 = vector.load %arg3[%c0_87, %c0_88, %c0_89] : memref<1x16x16xf32, #tpu.memory_space<vmem>>, vector<1x16x16xf32>
    %241 = vector.shape_cast %240 : vector<1x16x16xf32> to vector<16x16xf32>
    %c0_90 = arith.constant 0 : index
    %c48 = arith.constant 48 : index
    %242 = vector.load %arg10[%c0_90, %c48] : memref<16x64xf32, #tpu.memory_space<vmem>>, vector<16x16xf32>
    tpu.vector_store %arg10[%c0_90, %c48], %241 {strides = array<i32>} : memref<16x64xf32, #tpu.memory_space<vmem>>, vector<16x16xf32>,
    %c0_91 = arith.constant 0 : index
    %c0_92 = arith.constant 0 : index
    %243 = vector.load %arg10[%c0_91, %c0_92] : memref<16x64xf32, #tpu.memory_space<vmem>>, vector<16x64xf32>
    %cst_93 = arith.constant dense<0.000000e+00> : vector<64xf32>
    %244 = vector.multi_reduction <add>, %243, %cst_93 [0] : vector<16x64xf32> to vector<64xf32>
    %245 = vector.shape_cast %244 : vector<64xf32> to vector<1x64xf32>
    %cst_94 = arith.constant 1.600000e+01 : f32
    %246 = vector.broadcast %cst_94 : f32 to vector<1x64xf32>
    %247 = arith.divf %245, %246 : vector<1x64xf32>
    %248 = vector.broadcast %247 : vector<1x64xf32> to vector<16x64xf32>
    %249 = arith.subf %243, %248 : vector<16x64xf32>
    %250 = arith.mulf %249, %249 : vector<16x64xf32>
    %cst_95 = arith.constant dense<0.000000e+00> : vector<64xf32>
    %251 = vector.multi_reduction <add>, %250, %cst_95 [0] : vector<16x64xf32> to vector<64xf32>
    %252 = vector.shape_cast %251 : vector<64xf32> to vector<1x64xf32>
    %cst_96 = arith.constant 1.600000e+01 : f32
    %253 = vector.broadcast %cst_96 : f32 to vector<1x64xf32>
    %254 = arith.divf %252, %253 : vector<1x64xf32>
    %cst_97 = arith.constant 9.99999974E-6 : f32
    %255 = vector.broadcast %cst_97 : f32 to vector<1x64xf32>
    %256 = arith.addf %254, %255 : vector<1x64xf32>
    %257 = math.rsqrt %256 : vector<1x64xf32>
    %c0_98 = arith.constant 0 : index
    %c0_99 = arith.constant 0 : index
    %258 = vector.load %arg4[%c0_98, %c0_99] : memref<1x64xf32, #tpu.memory_space<vmem>>, vector<1x64xf32>
    %259 = arith.mulf %257, %258 : vector<1x64xf32>
    %260 = vector.broadcast %259 : vector<1x64xf32> to vector<16x64xf32>
    %261 = arith.mulf %249, %260 : vector<16x64xf32>
    %c0_100 = arith.constant 0 : index
    %c0_101 = arith.constant 0 : index
    %262 = vector.load %arg5[%c0_100, %c0_101] : memref<1x64xf32, #tpu.memory_space<vmem>>, vector<1x64xf32>
    %263 = vector.broadcast %262 : vector<1x64xf32> to vector<16x64xf32>
    %264 = arith.addf %261, %263 : vector<16x64xf32>
    %c0_102 = arith.constant 0 : index
    %c0_103 = arith.constant 0 : index
    %265 = vector.load %arg6[%c0_102, %c0_103] : memref<64x32xf32, #tpu.memory_space<vmem>>, vector<64x32xf32>
    %cst_104 = arith.constant dense<0.000000e+00> : vector<16x32xf32>
    %266 = tpu.matmul %264, %265, %cst_104 {dimension_numbers = #tpu.dot_dimension_numbers<[1], [0], [0], [1], [0, 0, 1, 1], [], []>} : vector<16x64xf32>, vector<64x32xf32>, vector<16x32xf32> -> vector<16x32xf32>
    %c0_105 = arith.constant 0 : index
    %c0_106 = arith.constant 0 : index
    %267 = vector.load %arg7[%c0_105, %c0_106] : memref<1x32xf32, #tpu.memory_space<vmem>>, vector<1x32xf32>
    %268 = vector.broadcast %267 : vector<1x32xf32> to vector<16x32xf32>
    %269 = arith.addf %266, %268 : vector<16x32xf32>
    %270 = vector.extract_strided_slice %269 {offsets = [0, 0], sizes = [16, 16], strides = [1, 1]} : vector<16x32xf32> to vector<16x16xf32>
    %271 = vector.extract_strided_slice %269 {offsets = [0, 16], sizes = [16, 16], strides = [1, 1]} : vector<16x32xf32> to vector<16x16xf32>
    %c0_107 = arith.constant 0 : index
    %c0_108 = arith.constant 0 : index
    %272 = vector.load %arg8[%c0_107, %c0_108] : memref<2x16xf32, #tpu.memory_space<vmem>>, vector<2x16xf32>
    %273 = arith.mulf %270, %271 : vector<16x16xf32>
    %cst_109 = arith.constant dense<0.000000e+00> : vector<2x16xf32>
    %274 = tpu.matmul %272, %273, %cst_109 {dimension_numbers = #tpu.dot_dimension_numbers<[1], [0], [0], [1], [0, 0, 1, 1], [], []>} : vector<2x16xf32>, vector<16x16xf32>, vector<2x16xf32> -> vector<2x16xf32>
    %275 = arith.mulf %270, %270 : vector<16x16xf32>
    %cst_110 = arith.constant dense<0.000000e+00> : vector<2x16xf32>
    %276 = tpu.matmul %272, %275, %cst_110 {dimension_numbers = #tpu.dot_dimension_numbers<[1], [0], [0], [1], [0, 0, 1, 1], [], []>} : vector<2x16xf32>, vector<16x16xf32>, vector<2x16xf32> -> vector<2x16xf32>
    %277 = arith.mulf %271, %271 : vector<16x16xf32>
    %cst_111 = arith.constant dense<0.000000e+00> : vector<2x16xf32>
    %278 = tpu.matmul %272, %277, %cst_111 {dimension_numbers = #tpu.dot_dimension_numbers<[1], [0], [0], [1], [0, 0, 1, 1], [], []>} : vector<2x16xf32>, vector<16x16xf32>, vector<2x16xf32> -> vector<2x16xf32>
    %279 = arith.mulf %276, %278 : vector<2x16xf32>
    %cst_112 = arith.constant 1.000000e-16 : f32
    %280 = vector.broadcast %cst_112 : f32 to vector<2x16xf32>
    %281 = arith.maximumf %279, %280 : vector<2x16xf32>
    %282 = math.rsqrt %281 : vector<2x16xf32>
    %283 = arith.mulf %274, %282 : vector<2x16xf32>
    %c0_113 = arith.constant 0 : index
    %c0_114 = arith.constant 0 : index
    %c0_115 = arith.constant 0 : index
    %284 = vector.load %arg9[%c0_113, %c0_114, %c0_115] : memref<1x2x16xf32, #tpu.memory_space<vmem>>, vector<1x2x16xf32>
    %285 = vector.shape_cast %284 : vector<1x2x16xf32> to vector<2x16xf32>
    %286 = vector.shape_cast %283 : vector<2x16xf32> to vector<1x2x16xf32>
    tpu.vector_store %arg9[%c0_113, %c0_114, %c0_115], %286 {strides = array<i32>} : memref<1x2x16xf32, #tpu.memory_space<vmem>>, vector<1x2x16xf32>,
    return
  }
  func.func @transform_0(%arg0: i32) -> (i32, i32, i32) {
    %c0_i32 = arith.constant 0 : i32
    %c0_i32_0 = arith.constant 0 : i32
    %c0_i32_1 = arith.constant 0 : i32
    return %arg0, %c0_i32, %c0_i32_0 : i32, i32, i32
  }
  func.func @transform_1(%arg0: i32) -> (i32, i32, i32) {
    %c0_i32 = arith.constant 0 : i32
    %c0_i32_0 = arith.constant 0 : i32
    %c0_i32_1 = arith.constant 0 : i32
    return %arg0, %c0_i32, %c0_i32_0 : i32, i32, i32
  }
  func.func @transform_2(%arg0: i32) -> (i32, i32, i32) {
    %c0_i32 = arith.constant 0 : i32
    %c0_i32_0 = arith.constant 0 : i32
    %c0_i32_1 = arith.constant 0 : i32
    return %arg0, %c0_i32, %c0_i32_0 : i32, i32, i32
  }
  func.func @transform_3(%arg0: i32) -> (i32, i32) {
    %c0_i32 = arith.constant 0 : i32
    %c0_i32_0 = arith.constant 0 : i32
    %c0_i32_1 = arith.constant 0 : i32
    return %c0_i32, %c0_i32_0 : i32, i32
  }
  func.func @transform_4(%arg0: i32) -> (i32, i32) {
    %c0_i32 = arith.constant 0 : i32
    %c0_i32_0 = arith.constant 0 : i32
    %c0_i32_1 = arith.constant 0 : i32
    return %c0_i32, %c0_i32_0 : i32, i32
  }
  func.func @transform_5(%arg0: i32) -> (i32, i32) {
    %c0_i32 = arith.constant 0 : i32
    %c0_i32_0 = arith.constant 0 : i32
    %c0_i32_1 = arith.constant 0 : i32
    return %c0_i32, %c0_i32_0 : i32, i32
  }
  func.func @transform_6(%arg0: i32) -> (i32, i32) {
    %c0_i32 = arith.constant 0 : i32
    %c0_i32_0 = arith.constant 0 : i32
    %c0_i32_1 = arith.constant 0 : i32
    return %c0_i32, %c0_i32_0 : i32, i32
  }
  func.func @transform_7(%arg0: i32) -> (i32, i32) {
    %c0_i32 = arith.constant 0 : i32
    %c0_i32_0 = arith.constant 0 : i32
    %c0_i32_1 = arith.constant 0 : i32
    return %c0_i32, %c0_i32_0 : i32, i32
  }
  func.func @transform_8(%arg0: i32) -> (i32, i32, i32) {
    %c0_i32 = arith.constant 0 : i32
    %c0_i32_0 = arith.constant 0 : i32
    %c0_i32_1 = arith.constant 0 : i32
    return %arg0, %c0_i32, %c0_i32_0 : i32, i32, i32
  }
}

</mosaic_0001>

<llo_original>
// kernel: tpu_custom_call.1
$region0: #{tpu_custom_call.1}
  #allocation0 [shape = 'u32[]', space=smem, size = 0x4, offset = 0x4, fixed_abs, tag = 'smem constant byte address 0x4 - core index']
  #allocation1 [shape = 'u32[72,128]{1,0:T(1,128)}', space=vmem, size = 0x9000, scoped, tag = 'internal scratch']
  #allocation2 [shape = 'f32[16,64]{1,0:T(8,128)}', space=vmem, size = 0x2000, scoped, tag = 'scratch operand']
  %s0 = inlined_call_operand.vmem [shape: f32[3,32,4], index: 0, kind: input, shape index: {}]
  %s1 = inlined_call_operand.vmem [shape: f32[3,32,4], index: 1, kind: input, shape index: {}]
  %s2 = inlined_call_operand.vmem [shape: f32[3,16,16], index: 2, kind: input, shape index: {}]
  %s3 = inlined_call_operand.vmem [shape: f32[1,64], index: 3, kind: input, shape index: {}]
  %s4 = inlined_call_operand.vmem [shape: f32[1,64], index: 4, kind: input, shape index: {}]
  %s5 = inlined_call_operand.vmem [shape: f32[64,32], index: 5, kind: input, shape index: {}]
  %s6 = inlined_call_operand.vmem [shape: f32[1,32], index: 6, kind: input, shape index: {}]
  %s7 = inlined_call_operand.vmem [shape: f32[2,16], index: 7, kind: input, shape index: {}]
  %s8 = inlined_call_operand.hbm [shape: f32[3,2,16], index: 8, kind: output, shape index: {}]
  %s9 = sld [smem:[#allocation0]]
  $region65: #{tpu_custom_call.1} parent=0
    _
  %s11 = ssub.s32 1, %s9
  %s12 = scalar_select 0, %s11, %s9
  $region1: #{tpu_custom_call.1} parent=0
    #allocation3 [shape = 'u8[2048]{0}', space=vmem, size = 0x800, scoped, tag = 'output window, operand 0']
    #allocation4 [shape = 's32[2]{0}', space=sflag, size = 0x8, scoped, tag = 'scoped memory for tpu_custom_call.1']
    %13 = vsyncpa [#allocation4], 0
    %s14 = scalar_lea.sflag [#allocation4], 1
    %15 = vsyncpa %s14, 0
    loop: start=0, step=1, limit=5
    $region2: #{tpu_custom_call.1} parent=1 // loop_pre_header
      _
    $region3: #{tpu_custom_call.1} parent=1 // loop_header
      %s17 = sphi 0, %s21
      %p18 = scmp.ge.s32.totalorder %s17, 5
      %s27 = sphi 0, %s29
      %s30 = sphi 0, %s27
      %s31 = sphi 0, %s30
      %s47 = sphi 0, %s31
      %s53 = sphi 0, %s55
      %s56 = sphi 0, %s53
      %s57 = sphi 0, %s56
      %s73 = sphi 0, %s57
      %s79 = sphi 0, %s81
      %s82 = sphi 0, %s79
      %s83 = sphi 0, %s82
      %s99 = sphi 0, %s83
      %s103 = sphi 0, %s103
      %s105 = sphi 0, %s103
      %s106 = sphi 0, %s105
      %s120 = sphi 0, %s106
      %s124 = sphi 0, %s124
      %s126 = sphi 0, %s124
      %s127 = sphi 0, %s126
      %s141 = sphi 0, %s127
      %s145 = sphi 0, %s145
      %s147 = sphi 0, %s145
      %s148 = sphi 0, %s147
      %s162 = sphi 0, %s148
      %s166 = sphi 0, %s166
      %s168 = sphi 0, %s166
      %s169 = sphi 0, %s168
      %s183 = sphi 0, %s169
      %s187 = sphi 0, %s187
      %s189 = sphi 0, %s187
      %s190 = sphi 0, %s189
      %s204 = sphi 0, %s190
      %s210 = sphi 0, %s212
      %s213 = sphi 0, %s210
      %s214 = sphi 0, %s213
      %s230 = sphi 0, %s214
    $region4: #{tpu_custom_call.1} parent=1 // loop_header_branch
      %20 = sbr.rel (%p18) target = $region8
    $region5: #{tpu_custom_call.1} parent=1 // loop_body
      %s22 = ssub.s32 %s17, 1
      %s23 = ssub.s32 %s17, 2
      %s24 = sadd.s32 %s17, 1
      %s25 = ssub.s32 %s17, %s24
      %p26 = scmp.eq.s32.totalorder %s25, 0
      %s28 = sadd.s32 %s27, 1
      %s29 = scalar_select %p26, %s27, %s28
      %p32 = pneg %p26
      %p33 = scmp.eq.s32.totalorder %s17, 2
      %p34 = por %p32, %p33
      %p35 = scmp.ne.s32.totalorder %s27, %s30
      %p36 = scmp.eq.s32.totalorder %s17, 0
      %p37 = por %p35, %p36
      %p38 = scmp.ne.s32.totalorder %s27, %s30
      %p39 = scmp.eq.s32.totalorder %s22, 2
      %p40 = por %p38, %p39
      %p41 = scmp.ne.s32.totalorder %s30, %s31
      %p42 = scmp.eq.s32.totalorder %s22, 0
      %p43 = por %p41, %p42
      %p44 = scmp.ne.s32.totalorder %s30, %s31
      %p45 = scmp.eq.s32.totalorder %s23, 2
      %p46 = por %p44, %p45
      %p48 = scmp.ne.s32.totalorder %s31, %s47
      %p49 = scmp.eq.s32.totalorder %s23, 0
      %p50 = por %p48, %p49
      %s51 = ssub.s32 %s17, %s24
      %p52 = scmp.eq.s32.totalorder %s51, 0
      %s54 = sadd.s32 %s53, 1
      %s55 = scalar_select %p52, %s53, %s54
      %p58 = pneg %p52
      %p59 = scmp.eq.s32.totalorder %s17, 2
      %p60 = por %p58, %p59
      %p61 = scmp.ne.s32.totalorder %s53, %s56
      %p62 = scmp.eq.s32.totalorder %s17, 0
      %p63 = por %p61, %p62
      %p64 = scmp.ne.s32.totalorder %s53, %s56
      %p65 = scmp.eq.s32.totalorder %s22, 2
      %p66 = por %p64, %p65
      %p67 = scmp.ne.s32.totalorder %s56, %s57
      %p68 = scmp.eq.s32.totalorder %s22, 0
      %p69 = por %p67, %p68
      %p70 = scmp.ne.s32.totalorder %s56, %s57
      %p71 = scmp.eq.s32.totalorder %s23, 2
      %p72 = por %p70, %p71
      %p74 = scmp.ne.s32.totalorder %s57, %s73
      %p75 = scmp.eq.s32.totalorder %s23, 0
      %p76 = por %p74, %p75
      %s77 = ssub.s32 %s17, %s24
      %p78 = scmp.eq.s32.totalorder %s77, 0
      %s80 = sadd.s32 %s79, 1
      %s81 = scalar_select %p78, %s79, %s80
      %p84 = pneg %p78
      %p85 = scmp.eq.s32.totalorder %s17, 2
      %p86 = por %p84, %p85
      %p87 = scmp.ne.s32.totalorder %s79, %s82
      %p88 = scmp.eq.s32.totalorder %s17, 0
      %p89 = por %p87, %p88
      %p90 = scmp.ne.s32.totalorder %s79, %s82
      %p91 = scmp.eq.s32.totalorder %s22, 2
      %p92 = por %p90, %p91
      %p93 = scmp.ne.s32.totalorder %s82, %s83
      %p94 = scmp.eq.s32.totalorder %s22, 0
      %p95 = por %p93, %p94
      %p96 = scmp.ne.s32.totalorder %s82, %s83
      %p97 = scmp.eq.s32.totalorder %s23, 2
      %p98 = por %p96, %p97
      %p100 = scmp.ne.s32.totalorder %s83, %s99
      %p101 = scmp.eq.s32.totalorder %s23, 0
      %p102 = por %p100, %p101
      %s104 = sadd.s32 %s103, 1
      %p107 = scmp.eq.s32.totalorder %s17, 2
      %p108 = scmp.ne.s32.totalorder %s103, %s105
      %p109 = scmp.eq.s32.totalorder %s17, 0
      %p110 = por %p108, %p109
      %p111 = scmp.ne.s32.totalorder %s103, %s105
      %p112 = scmp.eq.s32.totalorder %s22, 2
      %p113 = por %p111, %p112
      %p114 = scmp.ne.s32.totalorder %s105, %s106
      %p115 = scmp.eq.s32.totalorder %s22, 0
      %p116 = por %p114, %p115
      %p117 = scmp.ne.s32.totalorder %s105, %s106
      %p118 = scmp.eq.s32.totalorder %s23, 2
      %p119 = por %p117, %p118
      %p121 = scmp.ne.s32.totalorder %s106, %s120
      %p122 = scmp.eq.s32.totalorder %s23, 0
      %p123 = por %p121, %p122
      %s125 = sadd.s32 %s124, 1
      %p128 = scmp.eq.s32.totalorder %s17, 2
      %p129 = scmp.ne.s32.totalorder %s124, %s126
      %p130 = scmp.eq.s32.totalorder %s17, 0
      %p131 = por %p129, %p130
      %p132 = scmp.ne.s32.totalorder %s124, %s126
      %p133 = scmp.eq.s32.totalorder %s22, 2
      %p134 = por %p132, %p133
      %p135 = scmp.ne.s32.totalorder %s126, %s127
      %p136 = scmp.eq.s32.totalorder %s22, 0
      %p137 = por %p135, %p136
      %p138 = scmp.ne.s32.totalorder %s126, %s127
      %p139 = scmp.eq.s32.totalorder %s23, 2
      %p140 = por %p138, %p139
      %p142 = scmp.ne.s32.totalorder %s127, %s141
      %p143 = scmp.eq.s32.totalorder %s23, 0
      %p144 = por %p142, %p143
      %s146 = sadd.s32 %s145, 1
      %p149 = scmp.eq.s32.totalorder %s17, 2
      %p150 = scmp.ne.s32.totalorder %s145, %s147
      %p151 = scmp.eq.s32.totalorder %s17, 0
      %p152 = por %p150, %p151
      %p153 = scmp.ne.s32.totalorder %s145, %s147
      %p154 = scmp.eq.s32.totalorder %s22, 2
      %p155 = por %p153, %p154
      %p156 = scmp.ne.s32.totalorder %s147, %s148
      %p157 = scmp.eq.s32.totalorder %s22, 0
      %p158 = por %p156, %p157
      %p159 = scmp.ne.s32.totalorder %s147, %s148
      %p160 = scmp.eq.s32.totalorder %s23, 2
      %p161 = por %p159, %p160
      %p163 = scmp.ne.s32.totalorder %s148, %s162
      %p164 = scmp.eq.s32.totalorder %s23, 0
      %p165 = por %p163, %p164
      %s167 = sadd.s32 %s166, 1
      %p170 = scmp.eq.s32.totalorder %s17, 2
      %p171 = scmp.ne.s32.totalorder %s166, %s168
      %p172 = scmp.eq.s32.totalorder %s17, 0
      %p173 = por %p171, %p172
      %p174 = scmp.ne.s32.totalorder %s166, %s168
      %p175 = scmp.eq.s32.totalorder %s22, 2
      %p176 = por %p174, %p175
      %p177 = scmp.ne.s32.totalorder %s168, %s169
      %p178 = scmp.eq.s32.totalorder %s22, 0
      %p179 = por %p177, %p178
      %p180 = scmp.ne.s32.totalorder %s168, %s169
      %p181 = scmp.eq.s32.totalorder %s23, 2
      %p182 = por %p180, %p181
      %p184 = scmp.ne.s32.totalorder %s169, %s183
      %p185 = scmp.eq.s32.totalorder %s23, 0
      %p186 = por %p184, %p185
      %s188 = sadd.s32 %s187, 1
      %p191 = scmp.eq.s32.totalorder %s17, 2
      %p192 = scmp.ne.s32.totalorder %s187, %s189
      %p193 = scmp.eq.s32.totalorder %s17, 0
      %p194 = por %p192, %p193
      %p195 = scmp.ne.s32.totalorder %s187, %s189
      %p196 = scmp.eq.s32.totalorder %s22, 2
      %p197 = por %p195, %p196
      %p198 = scmp.ne.s32.totalorder %s189, %s190
      %p199 = scmp.eq.s32.totalorder %s22, 0
      %p200 = por %p198, %p199
      %p201 = scmp.ne.s32.totalorder %s189, %s190
      %p202 = scmp.eq.s32.totalorder %s23, 2
      %p203 = por %p201, %p202
      %p205 = scmp.ne.s32.totalorder %s190, %s204
      %p206 = scmp.eq.s32.totalorder %s23, 0
      %p207 = por %p205, %p206
      %s208 = ssub.s32 %s17, %s24
      %p209 = scmp.eq.s32.totalorder %s208, 0
      %s211 = sadd.s32 %s210, 1
      %s212 = scalar_select %p209, %s210, %s211
      %p215 = pneg %p209
      %p216 = scmp.eq.s32.totalorder %s17, 2
      %p217 = por %p215, %p216
      %p218 = scmp.ne.s32.totalorder %s210, %s213
      %p219 = scmp.eq.s32.totalorder %s17, 0
      %p220 = por %p218, %p219
      %p221 = scmp.ne.s32.totalorder %s210, %s213
      %p222 = scmp.eq.s32.totalorder %s22, 2
      %p223 = por %p221, %p222
      %p224 = scmp.ne.s32.totalorder %s213, %s214
      %p225 = scmp.eq.s32.totalorder %s22, 0
      %p226 = por %p224, %p225
      %p227 = scmp.ne.s32.totalorder %s213, %s214
      %p228 = scmp.eq.s32.totalorder %s23, 2
      %p229 = por %p227, %p228
      %p231 = scmp.ne.s32.totalorder %s214, %s230
      %p232 = scmp.eq.s32.totalorder %s23, 0
      %p233 = por %p231, %p232
      %p234 = scmp.le.s32.totalorder 1, %s17
      %p235 = scmp.lt.s32.totalorder %s17, 4
      %p236 = pnand %p234, %p235
      %p237 = pneg %p236
      // Predicated region
      $region9: #{tpu_custom_call.1} parent=5 // pred_check
        _
      $region10: #{tpu_custom_call.1} parent=5 // pred_check_branch
        %239 = sbr.rel (%p236) target = $region12
      $region11: #{tpu_custom_call.1} parent=5 // pred_region
        %s240 = ssub.s32 %s17, 1
        // Predicated region
        $region13: #{tpu_custom_call.1} parent=11 // pred_check
          %p241 = pneg %p116
        $region14: #{tpu_custom_call.1} parent=11 // pred_check_branch
          %243 = sbr.rel (%p241) target = $region16
        $region15: #{tpu_custom_call.1} parent=11 // pred_region
          _
        $region16: #{tpu_custom_call.1} parent=11 // pred_fallthru
          _
        // Predicated region
        $region17: #{tpu_custom_call.1} parent=11 // pred_check
          %p244 = pneg %p137
        $region18: #{tpu_custom_call.1} parent=11 // pred_check_branch
          %246 = sbr.rel (%p244) target = $region20
        $region19: #{tpu_custom_call.1} parent=11 // pred_region
          _
        $region20: #{tpu_custom_call.1} parent=11 // pred_fallthru
          _
        // Predicated region
        $region21: #{tpu_custom_call.1} parent=11 // pred_check
          %p247 = pneg %p158
        $region22: #{tpu_custom_call.1} parent=11 // pred_check_branch
          %249 = sbr.rel (%p247) target = $region24
        $region23: #{tpu_custom_call.1} parent=11 // pred_region
          _
        $region24: #{tpu_custom_call.1} parent=11 // pred_fallthru
          _
        // Predicated region
        $region25: #{tpu_custom_call.1} parent=11 // pred_check
          %p250 = pneg %p179
        $region26: #{tpu_custom_call.1} parent=11 // pred_check_branch
          %252 = sbr.rel (%p250) target = $region28
        $region27: #{tpu_custom_call.1} parent=11 // pred_region
          _
        $region28: #{tpu_custom_call.1} parent=11 // pred_fallthru
          _
        // Predicated region
        $region29: #{tpu_custom_call.1} parent=11 // pred_check
          %p253 = pneg %p200
        $region30: #{tpu_custom_call.1} parent=11 // pred_check_branch
          %255 = sbr.rel (%p253) target = $region32
        $region31: #{tpu_custom_call.1} parent=11 // pred_region
          _
        $region32: #{tpu_custom_call.1} parent=11 // pred_fallthru
          _
      $region12: #{tpu_custom_call.1} parent=5 // pred_fallthru
        _
      %p256 = scmp.lt.s32.totalorder %s17, 3
      // Predicated region
      $region33: #{tpu_custom_call.1} parent=5 // pred_check
        %p257 = pneg %p256
      $region34: #{tpu_custom_call.1} parent=5 // pred_check_branch
        %259 = sbr.rel (%p257) target = $region36
      $region35: #{tpu_custom_call.1} parent=5 // pred_region
        // Predicated region
        $region37: #{tpu_custom_call.1} parent=35 // pred_check
          %p260 = pneg %p37
        $region38: #{tpu_custom_call.1} parent=35 // pred_check_branch
          %262 = sbr.rel (%p260) target = $region40
        $region39: #{tpu_custom_call.1} parent=35 // pred_region
          %p263 = scmp.lt.s32.totalorder %s17, 2
          %s264 = scalar_select %p263, %s17, 2
          %s265 = smul.addr %s264, 4
          %s266 = smul.addr %s265, 8
          %s267 = scalar_lea.vmem %s0, %s266
        $region40: #{tpu_custom_call.1} parent=35 // pred_fallthru
          _
        // Predicated region
        $region41: #{tpu_custom_call.1} parent=35 // pred_check
          %p268 = pneg %p63
        $region42: #{tpu_custom_call.1} parent=35 // pred_check_branch
          %270 = sbr.rel (%p268) target = $region44
        $region43: #{tpu_custom_call.1} parent=35 // pred_region
          %p271 = scmp.lt.s32.totalorder %s17, 2
          %s272 = scalar_select %p271, %s17, 2
          %s273 = smul.addr %s272, 4
          %s274 = smul.addr %s273, 8
          %s275 = scalar_lea.vmem %s1, %s274
        $region44: #{tpu_custom_call.1} parent=35 // pred_fallthru
          _
        // Predicated region
        $region45: #{tpu_custom_call.1} parent=35 // pred_check
          %p276 = pneg %p89
        $region46: #{tpu_custom_call.1} parent=35 // pred_check_branch
          %278 = sbr.rel (%p276) target = $region48
        $region47: #{tpu_custom_call.1} parent=35 // pred_region
          %p279 = scmp.lt.s32.totalorder %s17, 2
          %s280 = scalar_select %p279, %s17, 2
          %s281 = smul.addr %s280, 2
          %s282 = smul.addr %s281, 8
          %s283 = scalar_lea.vmem %s2, %s282
        $region48: #{tpu_custom_call.1} parent=35 // pred_fallthru
          _
      $region36: #{tpu_custom_call.1} parent=5 // pred_fallthru
        _
      %p284 = scmp.le.s32.totalorder 1, %s17
      %p285 = scmp.lt.s32.totalorder %s17, 4
      %p286 = pnand %p284, %p285
      %p287 = pneg %p286
      // Predicated region
      $region49: #{tpu_custom_call.1} parent=5 // pred_check
        _
      $region50: #{tpu_custom_call.1} parent=5 // pred_check_branch
        %289 = sbr.rel (%p286) target = $region52
      $region51: #{tpu_custom_call.1} parent=5 // pred_region
        %s290 = ssub.s32 %s17, 1
        %p291 = scmp.lt.s32.totalorder %s22, 2
        %s292 = scalar_select %p291, %s22, 2
        %s293 = smul.addr %s292, 4
        %s294 = smul.addr %s293, 8
        %s295 = scalar_lea.vmem %s0, %s294
        %p296 = pneg %p43
        %p297 = pneg %p40
        %p298 = scmp.lt.s32.totalorder %s22, 2
        %s299 = scalar_select %p298, %s22, 2
        %s300 = smul.addr %s299, 4
        %s301 = smul.addr %s300, 8
        %s302 = scalar_lea.vmem %s1, %s301
        %p303 = pneg %p69
        %p304 = pneg %p66
        %p305 = scmp.lt.s32.totalorder %s22, 2
        %s306 = scalar_select %p305, %s22, 2
        %s307 = smul.addr %s306, 2
        %s308 = smul.addr %s307, 8
        %s309 = scalar_lea.vmem %s2, %s308
        %p310 = pneg %p95
        %p311 = pneg %p92
        %p312 = pneg %p116
        %p313 = pneg %p113
        %p314 = pneg %p137
        %p315 = pneg %p134
        %p316 = pneg %p158
        %p317 = pneg %p155
        %p318 = pneg %p179
        %p319 = pneg %p176
        %p320 = pneg %p200
        %p321 = pneg %p197
        %p322 = pneg %p226
        %p323 = pneg %p223
        %s324 = sand.u32 %s213, 1
        %s325 = scalar_lea.sflag [#allocation4], %s324
        %s326 = sand.u32 %s213, 1
        %s327 = smul.addr %s326, 2
        %s328 = scalar_lea.vmem [#allocation3], %s327
        %p329 = scmp.lt.s32.totalorder %s22, 2
        %s330 = scalar_select %p329, %s22, 2
        %s331 = smul.addr %s330, 4
        %s332 = smul.addr %s331, 8
        %s333 = scalar_lea.vmem %s0, %s332
        %p334 = scmp.lt.s32.totalorder %s22, 2
        %s335 = scalar_select %p334, %s22, 2
        %s336 = smul.addr %s335, 4
        %s337 = smul.addr %s336, 8
        %s338 = scalar_lea.vmem %s1, %s337
        %p339 = scmp.lt.s32.totalorder %s22, 2
        %s340 = scalar_select %p339, %s22, 2
        %s341 = smul.addr %s340, 2
        %s342 = smul.addr %s341, 8
        %s343 = scalar_lea.vmem %s2, %s342
        %v344 = vld [vmem:[%s333] sm:$0xff]
        %v345 = vld [vmem:[%s333 + $0x8] sm:$0xff]
        %v346 = vld [vmem:[%s333 + $0x10] sm:$0xff]
        %v347 = vld [vmem:[%s333 + $0x18] sm:$0xff]
        %v348 = vadd.f32 %v344, %v346
        %v349 = vadd.f32 %v345, %v347
        %v350 = vmul.f32 %v348, 0.5
        %v351 = vmul.f32 %v349, 0.5
        %v352 = vsub.f32 %v344, %v350
        %v353 = vsub.f32 %v345, %v351
        %v354 = vmul.f32 %v352, %v352
        %v355 = vmul.f32 %v353, %v353
        %v356 = vsub.f32 %v346, %v350
        %v357 = vsub.f32 %v347, %v351
        %v358 = vmul.f32 %v356, %v356
        %v359 = vmul.f32 %v357, %v357
        %v360 = vadd.f32 %v354, %v358
        %v361 = vadd.f32 %v355, %v359
        %v362 = vrsqrt.pop %v360
        %v363 = vmul.f32 %v362, %v360
        %v364 = vmul.f32 %v363, %v362
        %v365 = vmul.f32 0.5, %v364
        %v366 = vsub.f32 1.5, %v365
        %v367 = vmul.f32 %v362, %v366
        %v368 = vmul.f32 %v360, %v367
        %vm369 = vcmp.eq.f32.partialorder %v360, inf
        %v370 = vsel %vm369, %v360, %v368
        %vm371 = vcmp.eq.f32.partialorder %v360, 0.0
        %v372 = vand.u32 %v360, 2147483648
        %v373 = vsel %vm371, %v372, %v370
        %v374 = vrsqrt.pop %v361
        %v375 = vmul.f32 %v374, %v361
        %v376 = vmul.f32 %v375, %v374
        %v377 = vmul.f32 0.5, %v376
        %v378 = vsub.f32 1.5, %v377
        %v379 = vmul.f32 %v374, %v378
        %v380 = vmul.f32 %v361, %v379
        %vm381 = vcmp.eq.f32.partialorder %v361, inf
        %v382 = vsel %vm381, %v361, %v380
        %vm383 = vcmp.eq.f32.partialorder %v361, 0.0
        %v384 = vand.u32 %v361, 2147483648
        %v385 = vsel %vm383, %v384, %v382
        %v386 = vmax.f32 %v344, %v346
        %v387 = vmax.f32 %v345, %v347
        %v388 = vmin.f32 %v344, %v346
        %v389 = vmin.f32 %v345, %v347
        %vm390 = vcmask 31744
        %v391 = vsel %vm390, %v350, 0.0
        %v392 = vsel %vm390, %v351, 0.0
        %v393 = vadd.f32 %v391, %v392
        %v394 = vrot.slane %v393, 4
        %v395 = vadd.f32 %v393, %v394
        %v396 = vrot.slane %v395, 2
        %v397 = vadd.f32 %v395, %v396
        %v398 = vrot.slane %v397, 1
        %v399 = vadd.f32 %v397, %v398
        %v400 = vrcp.pop 16.0
        %v401 = vmul.f32 16.0, %v400
        %v402 = vsub.f32 1.0, %v401
        %v403 = vmul.f32 %v400, %v402
        %v404 = vadd.f32 %v400, %v403
        %vm405 = vweird.f32 %v400
        %v406 = vsel %vm405, %v400, %v404
        %v407 = vmul.f32 %v399, %v406
        %v408 = vsub.f32 %v350, %v407
        %v409 = vsub.f32 %v351, %v407
        %v410 = vmul.f32 %v408, %v408
        %v411 = vmul.f32 %v409, %v409
        %v412 = vsel %vm390, %v410, 0.0
        %v413 = vsel %vm390, %v411, 0.0
        %v414 = vadd.f32 %v412, %v413
        %v415 = vrot.slane %v414, 4
        %v416 = vadd.f32 %v414, %v415
        %v417 = vrot.slane %v416, 2
        %v418 = vadd.f32 %v416, %v417
        %v419 = vrot.slane %v418, 1
        %v420 = vadd.f32 %v418, %v419
        %v421 = vmul.f32 %v420, 0.06666667
        %v422 = vrsqrt.pop %v421
        %v423 = vmul.f32 %v422, %v421
        %v424 = vmul.f32 %v423, %v422
        %v425 = vmul.f32 0.5, %v424
        %v426 = vsub.f32 1.5, %v425
        %v427 = vmul.f32 %v422, %v426
        %v428 = vmul.f32 %v421, %v427
        %vm429 = vcmp.eq.f32.partialorder %v421, inf
        %v430 = vsel %vm429, %v421, %v428
        %vm431 = vcmp.eq.f32.partialorder %v421, 0.0
        %v432 = vand.u32 %v421, 2147483648
        %v433 = vsel %vm431, %v432, %v430
        %v434 = vmax.f32 %v433, 1e-08
        %v435 = vrcp.pop %v434
        %v436 = vmul.f32 %v434, %v435
        %v437 = vsub.f32 1.0, %v436
        %v438 = vmul.f32 %v435, %v437
        %v439 = vadd.f32 %v435, %v438
        %vm440 = vweird.f32 %v434
        %vm441 = vweird.f32 %v435
        %vm442 = vmor %vm440, %vm441
        %v443 = vsel %vm442, %v435, %v439
        %v444 = vand.u32 2147483647, %v434
        %vm445 = vcmp.eq.f32.partialorder %v444, 8.507059e+37
        %v446 = vand.u32 %v434, 2147483648
        %v447 = vor.u32 1.1754944e-38, %v446
        %v448 = vsel %vm445, %v447, %v443
        %v449 = vmul.f32 %v408, %v448
        %v450 = vmul.f32 %v409, %v448
        %451 = vst.msk [vmem:[#allocation2] sm:$0xff] %vm390, %v449
        %452 = vst.msk [vmem:[#allocation2 + $0x8] sm:$0xff] %vm390, %v450
        %v453 = vsel %vm390, %v373, 0.0
        %v454 = vsel %vm390, %v385, 0.0
        %v455 = vadd.f32 %v453, %v454
        %v456 = vrot.slane %v455, 4
        %v457 = vadd.f32 %v455, %v456
        %v458 = vrot.slane %v457, 2
        %v459 = vadd.f32 %v457, %v458
        %v460 = vrot.slane %v459, 1
        %v461 = vadd.f32 %v459, %v460
        %v462 = vmul.f32 %v461, %v406
        %v463 = vsub.f32 %v373, %v462
        %v464 = vsub.f32 %v385, %v462
        %v465 = vmul.f32 %v463, %v463
        %v466 = vmul.f32 %v464, %v464
        %v467 = vsel %vm390, %v465, 0.0
        %v468 = vsel %vm390, %v466, 0.0
        %v469 = vadd.f32 %v467, %v468
        %v470 = vrot.slane %v469, 4
        %v471 = vadd.f32 %v469, %v470
        %v472 = vrot.slane %v471, 2
        %v473 = vadd.f32 %v471, %v472
        %v474 = vrot.slane %v473, 1
        %v475 = vadd.f32 %v473, %v474
        %v476 = vmul.f32 %v475, 0.06666667
        %v477 = vrsqrt.pop %v476
        %v478 = vmul.f32 %v477, %v476
        %v479 = vmul.f32 %v478, %v477
        %v480 = vmul.f32 0.5, %v479
        %v481 = vsub.f32 1.5, %v480
        %v482 = vmul.f32 %v477, %v481
        %v483 = vmul.f32 %v476, %v482
        %vm484 = vcmp.eq.f32.partialorder %v476, inf
        %v485 = vsel %vm484, %v476, %v483
        %vm486 = vcmp.eq.f32.partialorder %v476, 0.0
        %v487 = vand.u32 %v476, 2147483648
        %v488 = vsel %vm486, %v487, %v485
        %v489 = vmax.f32 %v488, 1e-08
        %v490 = vrcp.pop %v489
        %v491 = vmul.f32 %v489, %v490
        %v492 = vsub.f32 1.0, %v491
        %v493 = vmul.f32 %v490, %v492
        %v494 = vadd.f32 %v490, %v493
        %vm495 = vweird.f32 %v489
        %vm496 = vweird.f32 %v490
        %vm497 = vmor %vm495, %vm496
        %v498 = vsel %vm497, %v490, %v494
        %v499 = vand.u32 2147483647, %v489
        %vm500 = vcmp.eq.f32.partialorder %v499, 8.507059e+37
        %v501 = vand.u32 %v489, 2147483648
        %v502 = vor.u32 1.1754944e-38, %v501
        %v503 = vsel %vm500, %v502, %v498
        %v504 = vmul.f32 %v463, %v503
        %v505 = vmul.f32 %v464, %v503
        %508 = vrot.lane.b32.xlu0 %v504, 4
        %v509 = vpop.permute.xlu0 %508
        %510 = vrot.lane.b32.xlu0 %v505, 4
        %v511 = vpop.permute.xlu0 %510
        %vm514 = vcmask 64544
        %515 = vst.msk [vmem:[#allocation2] sm:$0xff] %vm514, %v509
        %516 = vst.msk [vmem:[#allocation2 + $0x8] sm:$0xff] %vm514, %v511
        %v517 = vsel %vm390, %v386, 0.0
        %v518 = vsel %vm390, %v387, 0.0
        %v519 = vadd.f32 %v517, %v518
        %v520 = vrot.slane %v519, 4
        %v521 = vadd.f32 %v519, %v520
        %v522 = vrot.slane %v521, 2
        %v523 = vadd.f32 %v521, %v522
        %v524 = vrot.slane %v523, 1
        %v525 = vadd.f32 %v523, %v524
        %v526 = vmul.f32 %v525, %v406
        %v527 = vsub.f32 %v386, %v526
        %v528 = vsub.f32 %v387, %v526
        %v529 = vmul.f32 %v527, %v527
        %v530 = vmul.f32 %v528, %v528
        %v531 = vsel %vm390, %v529, 0.0
        %v532 = vsel %vm390, %v530, 0.0
        %v533 = vadd.f32 %v531, %v532
        %v534 = vrot.slane %v533, 4
        %v535 = vadd.f32 %v533, %v534
        %v536 = vrot.slane %v535, 2
        %v537 = vadd.f32 %v535, %v536
        %v538 = vrot.slane %v537, 1
        %v539 = vadd.f32 %v537, %v538
        %v540 = vmul.f32 %v539, 0.06666667
        %v541 = vrsqrt.pop %v540
        %v542 = vmul.f32 %v541, %v540
        %v543 = vmul.f32 %v542, %v541
        %v544 = vmul.f32 0.5, %v543
        %v545 = vsub.f32 1.5, %v544
        %v546 = vmul.f32 %v541, %v545
        %v547 = vmul.f32 %v540, %v546
        %vm548 = vcmp.eq.f32.partialorder %v540, inf
        %v549 = vsel %vm548, %v540, %v547
        %vm550 = vcmp.eq.f32.partialorder %v540, 0.0
        %v551 = vand.u32 %v540, 2147483648
        %v552 = vsel %vm550, %v551, %v549
        %v553 = vmax.f32 %v552, 1e-08
        %v554 = vrcp.pop %v553
        %v555 = vmul.f32 %v553, %v554
        %v556 = vsub.f32 1.0, %v555
        %v557 = vmul.f32 %v554, %v556
        %v558 = vadd.f32 %v554, %v557
        %vm559 = vweird.f32 %v553
        %vm560 = vweird.f32 %v554
        %vm561 = vmor %vm559, %vm560
        %v562 = vsel %vm561, %v554, %v558
        %v563 = vand.u32 2147483647, %v553
        %vm564 = vcmp.eq.f32.partialorder %v563, 8.507059e+37
        %v565 = vand.u32 %v553, 2147483648
        %v566 = vor.u32 1.1754944e-38, %v565
        %v567 = vsel %vm564, %v566, %v562
        %v568 = vmul.f32 %v527, %v567
        %v569 = vmul.f32 %v528, %v567
        %572 = vrot.lane.b32.xlu0 %v568, 8
        %v573 = vpop.permute.xlu0 %572
        %574 = vrot.lane.b32.xlu0 %v569, 8
        %v575 = vpop.permute.xlu0 %574
        %vm578 = vcmask 97344
        %579 = vst.msk [vmem:[#allocation2] sm:$0xff] %vm578, %v573
        %580 = vst.msk [vmem:[#allocation2 + $0x8] sm:$0xff] %vm578, %v575
        %v581 = vsel %vm390, %v388, 0.0
        %v582 = vsel %vm390, %v389, 0.0
        %v583 = vadd.f32 %v581, %v582
        %v584 = vrot.slane %v583, 4
        %v585 = vadd.f32 %v583, %v584
        %v586 = vrot.slane %v585, 2
        %v587 = vadd.f32 %v585, %v586
        %v588 = vrot.slane %v587, 1
        %v589 = vadd.f32 %v587, %v588
        %v590 = vmul.f32 %v589, %v406
        %v591 = vsub.f32 %v388, %v590
        %v592 = vsub.f32 %v389, %v590
        %v593 = vmul.f32 %v591, %v591
        %v594 = vmul.f32 %v592, %v592
        %v595 = vsel %vm390, %v593, 0.0
        %v596 = vsel %vm390, %v594, 0.0
        %v597 = vadd.f32 %v595, %v596
        %v598 = vrot.slane %v597, 4
        %v599 = vadd.f32 %v597, %v598
        %v600 = vrot.slane %v599, 2
        %v601 = vadd.f32 %v599, %v600
        %v602 = vrot.slane %v601, 1
        %v603 = vadd.f32 %v601, %v602
        %v604 = vmul.f32 %v603, 0.06666667
        %v605 = vrsqrt.pop %v604
        %v606 = vmul.f32 %v605, %v604
        %v607 = vmul.f32 %v606, %v605
        %v608 = vmul.f32 0.5, %v607
        %v609 = vsub.f32 1.5, %v608
        %v610 = vmul.f32 %v605, %v609
        %v611 = vmul.f32 %v604, %v610
        %vm612 = vcmp.eq.f32.partialorder %v604, inf
        %v613 = vsel %vm612, %v604, %v611
        %vm614 = vcmp.eq.f32.partialorder %v604, 0.0
        %v615 = vand.u32 %v604, 2147483648
        %v616 = vsel %vm614, %v615, %v613
        %v617 = vmax.f32 %v616, 1e-08
        %v618 = vrcp.pop %v617
        %v619 = vmul.f32 %v617, %v618
        %v620 = vsub.f32 1.0, %v619
        %v621 = vmul.f32 %v618, %v620
        %v622 = vadd.f32 %v618, %v621
        %vm623 = vweird.f32 %v617
        %vm624 = vweird.f32 %v618
        %vm625 = vmor %vm623, %vm624
        %v626 = vsel %vm625, %v618, %v622
        %v627 = vand.u32 2147483647, %v617
        %vm628 = vcmp.eq.f32.partialorder %v627, 8.507059e+37
        %v629 = vand.u32 %v617, 2147483648
        %v630 = vor.u32 1.1754944e-38, %v629
        %v631 = vsel %vm628, %v630, %v626
        %v632 = vmul.f32 %v591, %v631
        %v633 = vmul.f32 %v592, %v631
        %636 = vrot.lane.b32.xlu0 %v632, 12
        %v637 = vpop.permute.xlu0 %636
        %638 = vrot.lane.b32.xlu0 %v633, 12
        %v639 = vpop.permute.xlu0 %638
        %vm642 = vcmask 130144
        %643 = vst.msk [vmem:[#allocation2] sm:$0xff] %vm642, %v637
        %644 = vst.msk [vmem:[#allocation2 + $0x8] sm:$0xff] %vm642, %v639
        %v645 = vsel %vm390, %v344, 0.0
        %v646 = vsel %vm390, %v345, 0.0
        %v647 = vadd.f32 %v645, %v646
        %v648 = vrot.slane %v647, 4
        %v649 = vadd.f32 %v647, %v648
        %v650 = vrot.slane %v649, 2
        %v651 = vadd.f32 %v649, %v650
        %v652 = vrot.slane %v651, 1
        %v653 = vadd.f32 %v651, %v652
        %v654 = vmul.f32 %v653, %v406
        %v655 = vsub.f32 %v344, %v654
        %v656 = vsub.f32 %v345, %v654
        %v657 = vmul.f32 %v655, %v655
        %v658 = vmul.f32 %v656, %v656
        %v659 = vsel %vm390, %v657, 0.0
        %v660 = vsel %vm390, %v658, 0.0
        %v661 = vadd.f32 %v659, %v660
        %v662 = vrot.slane %v661, 4
        %v663 = vadd.f32 %v661, %v662
        %v664 = vrot.slane %v663, 2
        %v665 = vadd.f32 %v663, %v664
        %v666 = vrot.slane %v665, 1
        %v667 = vadd.f32 %v665, %v666
        %v668 = vmul.f32 %v667, 0.06666667
        %v669 = vrsqrt.pop %v668
        %v670 = vmul.f32 %v669, %v668
        %v671 = vmul.f32 %v670, %v669
        %v672 = vmul.f32 0.5, %v671
        %v673 = vsub.f32 1.5, %v672
        %v674 = vmul.f32 %v669, %v673
        %v675 = vmul.f32 %v668, %v674
        %vm676 = vcmp.eq.f32.partialorder %v668, inf
        %v677 = vsel %vm676, %v668, %v675
        %vm678 = vcmp.eq.f32.partialorder %v668, 0.0
        %v679 = vand.u32 %v668, 2147483648
        %v680 = vsel %vm678, %v679, %v677
        %v681 = vmax.f32 %v680, 1e-08
        %v682 = vrcp.pop %v681
        %v683 = vmul.f32 %v681, %v682
        %v684 = vsub.f32 1.0, %v683
        %v685 = vmul.f32 %v682, %v684
        %v686 = vadd.f32 %v682, %v685
        %vm687 = vweird.f32 %v681
        %vm688 = vweird.f32 %v682
        %vm689 = vmor %vm687, %vm688
        %v690 = vsel %vm689, %v682, %v686
        %v691 = vand.u32 2147483647, %v681
        %vm692 = vcmp.eq.f32.partialorder %v691, 8.507059e+37
        %v693 = vand.u32 %v681, 2147483648
        %v694 = vor.u32 1.1754944e-38, %v693
        %v695 = vsel %vm692, %v694, %v690
        %v696 = vmul.f32 %v655, %v695
        %v697 = vmul.f32 %v656, %v695
        %700 = vrot.lane.b32.xlu0 %v696, 16
        %v701 = vpop.permute.xlu0 %700
        %702 = vrot.lane.b32.xlu0 %v697, 16
        %v703 = vpop.permute.xlu0 %702
        %vm706 = vcmask 162944
        %707 = vst.msk [vmem:[#allocation2] sm:$0xff] %vm706, %v701
        %708 = vst.msk [vmem:[#allocation2 + $0x8] sm:$0xff] %vm706, %v703
        %v709 = vsel %vm390, %v346, 0.0
        %v710 = vsel %vm390, %v347, 0.0
        %v711 = vadd.f32 %v709, %v710
        %v712 = vrot.slane %v711, 4
        %v713 = vadd.f32 %v711, %v712
        %v714 = vrot.slane %v713, 2
        %v715 = vadd.f32 %v713, %v714
        %v716 = vrot.slane %v715, 1
        %v717 = vadd.f32 %v715, %v716
        %v718 = vmul.f32 %v717, %v406
        %v719 = vsub.f32 %v346, %v718
        %v720 = vsub.f32 %v347, %v718
        %v721 = vmul.f32 %v719, %v719
        %v722 = vmul.f32 %v720, %v720
        %v723 = vsel %vm390, %v721, 0.0
        %v724 = vsel %vm390, %v722, 0.0
        %v725 = vadd.f32 %v723, %v724
        %v726 = vrot.slane %v725, 4
        %v727 = vadd.f32 %v725, %v726
        %v728 = vrot.slane %v727, 2
        %v729 = vadd.f32 %v727, %v728
        %v730 = vrot.slane %v729, 1
        %v731 = vadd.f32 %v729, %v730
        %v732 = vmul.f32 %v731, 0.06666667
        %v733 = vrsqrt.pop %v732
        %v734 = vmul.f32 %v733, %v732
        %v735 = vmul.f32 %v734, %v733
        %v736 = vmul.f32 0.5, %v735
        %v737 = vsub.f32 1.5, %v736
        %v738 = vmul.f32 %v733, %v737
        %v739 = vmul.f32 %v732, %v738
        %vm740 = vcmp.eq.f32.partialorder %v732, inf
        %v741 = vsel %vm740, %v732, %v739
        %vm742 = vcmp.eq.f32.partialorder %v732, 0.0
        %v743 = vand.u32 %v732, 2147483648
        %v744 = vsel %vm742, %v743, %v741
        %v745 = vmax.f32 %v744, 1e-08
        %v746 = vrcp.pop %v745
        %v747 = vmul.f32 %v745, %v746
        %v748 = vsub.f32 1.0, %v747
        %v749 = vmul.f32 %v746, %v748
        %v750 = vadd.f32 %v746, %v749
        %vm751 = vweird.f32 %v745
        %vm752 = vweird.f32 %v746
        %vm753 = vmor %vm751, %vm752
        %v754 = vsel %vm753, %v746, %v750
        %v755 = vand.u32 2147483647, %v745
        %vm756 = vcmp.eq.f32.partialorder %v755, 8.507059e+37
        %v757 = vand.u32 %v745, 2147483648
        %v758 = vor.u32 1.1754944e-38, %v757
        %v759 = vsel %vm756, %v758, %v754
        %v760 = vmul.f32 %v719, %v759
        %v761 = vmul.f32 %v720, %v759
        %764 = vrot.lane.b32.xlu0 %v760, 20
        %v765 = vpop.permute.xlu0 %764
        %766 = vrot.lane.b32.xlu0 %v761, 20
        %v767 = vpop.permute.xlu0 %766
        %vm770 = vcmask 195744
        %771 = vst.msk [vmem:[#allocation2] sm:$0xff] %vm770, %v765
        %772 = vst.msk [vmem:[#allocation2 + $0x8] sm:$0xff] %vm770, %v767
        %v773 = vld [vmem:[%s338] sm:$0xff]
        %v774 = vld [vmem:[%s338 + $0x8] sm:$0xff]
        %v775 = vld [vmem:[%s338 + $0x10] sm:$0xff]
        %v776 = vld [vmem:[%s338 + $0x18] sm:$0xff]
        %v777 = vadd.f32 %v773, %v775
        %v778 = vadd.f32 %v774, %v776
        %v779 = vmul.f32 %v777, 0.5
        %v780 = vmul.f32 %v778, 0.5
        %v781 = vsub.f32 %v773, %v779
        %v782 = vsub.f32 %v774, %v780
        %v783 = vmul.f32 %v781, %v781
        %v784 = vmul.f32 %v782, %v782
        %v785 = vsub.f32 %v775, %v779
        %v786 = vsub.f32 %v776, %v780
        %v787 = vmul.f32 %v785, %v785
        %v788 = vmul.f32 %v786, %v786
        %v789 = vadd.f32 %v783, %v787
        %v790 = vadd.f32 %v784, %v788
        %v791 = vrsqrt.pop %v789
        %v792 = vmul.f32 %v791, %v789
        %v793 = vmul.f32 %v792, %v791
        %v794 = vmul.f32 0.5, %v793
        %v795 = vsub.f32 1.5, %v794
        %v796 = vmul.f32 %v791, %v795
        %v797 = vmul.f32 %v789, %v796
        %vm798 = vcmp.eq.f32.partialorder %v789, inf
        %v799 = vsel %vm798, %v789, %v797
        %vm800 = vcmp.eq.f32.partialorder %v789, 0.0
        %v801 = vand.u32 %v789, 2147483648
        %v802 = vsel %vm800, %v801, %v799
        %v803 = vrsqrt.pop %v790
        %v804 = vmul.f32 %v803, %v790
        %v805 = vmul.f32 %v804, %v803
        %v806 = vmul.f32 0.5, %v805
        %v807 = vsub.f32 1.5, %v806
        %v808 = vmul.f32 %v803, %v807
        %v809 = vmul.f32 %v790, %v808
        %vm810 = vcmp.eq.f32.partialorder %v790, inf
        %v811 = vsel %vm810, %v790, %v809
        %vm812 = vcmp.eq.f32.partialorder %v790, 0.0
        %v813 = vand.u32 %v790, 2147483648
        %v814 = vsel %vm812, %v813, %v811
        %v815 = vmax.f32 %v773, %v775
        %v816 = vmax.f32 %v774, %v776
        %v817 = vmin.f32 %v773, %v775
        %v818 = vmin.f32 %v774, %v776
        %v819 = vsel %vm390, %v779, 0.0
        %v820 = vsel %vm390, %v780, 0.0
        %v821 = vadd.f32 %v819, %v820
        %v822 = vrot.slane %v821, 4
        %v823 = vadd.f32 %v821, %v822
        %v824 = vrot.slane %v823, 2
        %v825 = vadd.f32 %v823, %v824
        %v826 = vrot.slane %v825, 1
        %v827 = vadd.f32 %v825, %v826
        %v828 = vmul.f32 %v827, %v406
        %v829 = vsub.f32 %v779, %v828
        %v830 = vsub.f32 %v780, %v828
        %v831 = vmul.f32 %v829, %v829
        %v832 = vmul.f32 %v830, %v830
        %v833 = vsel %vm390, %v831, 0.0
        %v834 = vsel %vm390, %v832, 0.0
        %v835 = vadd.f32 %v833, %v834
        %v836 = vrot.slane %v835, 4
        %v837 = vadd.f32 %v835, %v836
        %v838 = vrot.slane %v837, 2
        %v839 = vadd.f32 %v837, %v838
        %v840 = vrot.slane %v839, 1
        %v841 = vadd.f32 %v839, %v840
        %v842 = vmul.f32 %v841, 0.06666667
        %v843 = vrsqrt.pop %v842
        %v844 = vmul.f32 %v843, %v842
        %v845 = vmul.f32 %v844, %v843
        %v846 = vmul.f32 0.5, %v845
        %v847 = vsub.f32 1.5, %v846
        %v848 = vmul.f32 %v843, %v847
        %v849 = vmul.f32 %v842, %v848
        %vm850 = vcmp.eq.f32.partialorder %v842, inf
        %v851 = vsel %vm850, %v842, %v849
        %vm852 = vcmp.eq.f32.partialorder %v842, 0.0
        %v853 = vand.u32 %v842, 2147483648
        %v854 = vsel %vm852, %v853, %v851
        %v855 = vmax.f32 %v854, 1e-08
        %v856 = vrcp.pop %v855
        %v857 = vmul.f32 %v855, %v856
        %v858 = vsub.f32 1.0, %v857
        %v859 = vmul.f32 %v856, %v858
        %v860 = vadd.f32 %v856, %v859
        %vm861 = vweird.f32 %v855
        %vm862 = vweird.f32 %v856
        %vm863 = vmor %vm861, %vm862
        %v864 = vsel %vm863, %v856, %v860
        %v865 = vand.u32 2147483647, %v855
        %vm866 = vcmp.eq.f32.partialorder %v865, 8.507059e+37
        %v867 = vand.u32 %v855, 2147483648
        %v868 = vor.u32 1.1754944e-38, %v867
        %v869 = vsel %vm866, %v868, %v864
        %v870 = vmul.f32 %v829, %v869
        %v871 = vmul.f32 %v830, %v869
        %874 = vrot.lane.b32.xlu0 %v870, 24
        %v875 = vpop.permute.xlu0 %874
        %876 = vrot.lane.b32.xlu0 %v871, 24
        %v877 = vpop.permute.xlu0 %876
        %vm880 = vcmask 228544
        %881 = vst.msk [vmem:[#allocation2] sm:$0xff] %vm880, %v875
        %882 = vst.msk [vmem:[#allocation2 + $0x8] sm:$0xff] %vm880, %v877
        %v883 = vsel %vm390, %v802, 0.0
        %v884 = vsel %vm390, %v814, 0.0
        %v885 = vadd.f32 %v883, %v884
        %v886 = vrot.slane %v885, 4
        %v887 = vadd.f32 %v885, %v886
        %v888 = vrot.slane %v887, 2
        %v889 = vadd.f32 %v887, %v888
        %v890 = vrot.slane %v889, 1
        %v891 = vadd.f32 %v889, %v890
        %v892 = vmul.f32 %v891, %v406
        %v893 = vsub.f32 %v802, %v892
        %v894 = vsub.f32 %v814, %v892
        %v895 = vmul.f32 %v893, %v893
        %v896 = vmul.f32 %v894, %v894
        %v897 = vsel %vm390, %v895, 0.0
        %v898 = vsel %vm390, %v896, 0.0
        %v899 = vadd.f32 %v897, %v898
        %v900 = vrot.slane %v899, 4
        %v901 = vadd.f32 %v899, %v900
        %v902 = vrot.slane %v901, 2
        %v903 = vadd.f32 %v901, %v902
        %v904 = vrot.slane %v903, 1
        %v905 = vadd.f32 %v903, %v904
        %v906 = vmul.f32 %v905, 0.06666667
        %v907 = vrsqrt.pop %v906
        %v908 = vmul.f32 %v907, %v906
        %v909 = vmul.f32 %v908, %v907
        %v910 = vmul.f32 0.5, %v909
        %v911 = vsub.f32 1.5, %v910
        %v912 = vmul.f32 %v907, %v911
        %v913 = vmul.f32 %v906, %v912
        %vm914 = vcmp.eq.f32.partialorder %v906, inf
        %v915 = vsel %vm914, %v906, %v913
        %vm916 = vcmp.eq.f32.partialorder %v906, 0.0
        %v917 = vand.u32 %v906, 2147483648
        %v918 = vsel %vm916, %v917, %v915
        %v919 = vmax.f32 %v918, 1e-08
        %v920 = vrcp.pop %v919
        %v921 = vmul.f32 %v919, %v920
        %v922 = vsub.f32 1.0, %v921
        %v923 = vmul.f32 %v920, %v922
        %v924 = vadd.f32 %v920, %v923
        %vm925 = vweird.f32 %v919
        %vm926 = vweird.f32 %v920
        %vm927 = vmor %vm925, %vm926
        %v928 = vsel %vm927, %v920, %v924
        %v929 = vand.u32 2147483647, %v919
        %vm930 = vcmp.eq.f32.partialorder %v929, 8.507059e+37
        %v931 = vand.u32 %v919, 2147483648
        %v932 = vor.u32 1.1754944e-38, %v931
        %v933 = vsel %vm930, %v932, %v928
        %v934 = vmul.f32 %v893, %v933
        %v935 = vmul.f32 %v894, %v933
        %938 = vrot.lane.b32.xlu0 %v934, 28
        %v939 = vpop.permute.xlu0 %938
        %940 = vrot.lane.b32.xlu0 %v935, 28
        %v941 = vpop.permute.xlu0 %940
        %vm944 = vcmask 261344
        %945 = vst.msk [vmem:[#allocation2] sm:$0xff] %vm944, %v939
        %946 = vst.msk [vmem:[#allocation2 + $0x8] sm:$0xff] %vm944, %v941
        %v947 = vsel %vm390, %v815, 0.0
        %v948 = vsel %vm390, %v816, 0.0
        %v949 = vadd.f32 %v947, %v948
        %v950 = vrot.slane %v949, 4
        %v951 = vadd.f32 %v949, %v950
        %v952 = vrot.slane %v951, 2
        %v953 = vadd.f32 %v951, %v952
        %v954 = vrot.slane %v953, 1
        %v955 = vadd.f32 %v953, %v954
        %v956 = vmul.f32 %v955, %v406
        %v957 = vsub.f32 %v815, %v956
        %v958 = vsub.f32 %v816, %v956
        %v959 = vmul.f32 %v957, %v957
        %v960 = vmul.f32 %v958, %v958
        %v961 = vsel %vm390, %v959, 0.0
        %v962 = vsel %vm390, %v960, 0.0
        %v963 = vadd.f32 %v961, %v962
        %v964 = vrot.slane %v963, 4
        %v965 = vadd.f32 %v963, %v964
        %v966 = vrot.slane %v965, 2
        %v967 = vadd.f32 %v965, %v966
        %v968 = vrot.slane %v967, 1
        %v969 = vadd.f32 %v967, %v968
        %v970 = vmul.f32 %v969, 0.06666667
        %v971 = vrsqrt.pop %v970
        %v972 = vmul.f32 %v971, %v970
        %v973 = vmul.f32 %v972, %v971
        %v974 = vmul.f32 0.5, %v973
        %v975 = vsub.f32 1.5, %v974
        %v976 = vmul.f32 %v971, %v975
        %v977 = vmul.f32 %v970, %v976
        %vm978 = vcmp.eq.f32.partialorder %v970, inf
        %v979 = vsel %vm978, %v970, %v977
        %vm980 = vcmp.eq.f32.partialorder %v970, 0.0
        %v981 = vand.u32 %v970, 2147483648
        %v982 = vsel %vm980, %v981, %v979
        %v983 = vmax.f32 %v982, 1e-08
        %v984 = vrcp.pop %v983
        %v985 = vmul.f32 %v983, %v984
        %v986 = vsub.f32 1.0, %v985
        %v987 = vmul.f32 %v984, %v986
        %v988 = vadd.f32 %v984, %v987
        %vm989 = vweird.f32 %v983
        %vm990 = vweird.f32 %v984
        %vm991 = vmor %vm989, %vm990
        %v992 = vsel %vm991, %v984, %v988
        %v993 = vand.u32 2147483647, %v983
        %vm994 = vcmp.eq.f32.partialorder %v993, 8.507059e+37
        %v995 = vand.u32 %v983, 2147483648
        %v996 = vor.u32 1.1754944e-38, %v995
        %v997 = vsel %vm994, %v996, %v992
        %v998 = vmul.f32 %v957, %v997
        %v999 = vmul.f32 %v958, %v997
        %1002 = vrot.lane.b32.xlu0 %v998, 32
        %v1003 = vpop.permute.xlu0 %1002
        %1004 = vrot.lane.b32.xlu0 %v999, 32
        %v1005 = vpop.permute.xlu0 %1004
        %vm1008 = vcmask 294144
        %1009 = vst.msk [vmem:[#allocation2] sm:$0xff] %vm1008, %v1003
        %1010 = vst.msk [vmem:[#allocation2 + $0x8] sm:$0xff] %vm1008, %v1005
        %v1011 = vsel %vm390, %v817, 0.0
        %v1012 = vsel %vm390, %v818, 0.0
        %v1013 = vadd.f32 %v1011, %v1012
        %v1014 = vrot.slane %v1013, 4
        %v1015 = vadd.f32 %v1013, %v1014
        %v1016 = vrot.slane %v1015, 2
        %v1017 = vadd.f32 %v1015, %v1016
        %v1018 = vrot.slane %v1017, 1
        %v1019 = vadd.f32 %v1017, %v1018
        %v1020 = vmul.f32 %v1019, %v406
        %v1021 = vsub.f32 %v817, %v1020
        %v1022 = vsub.f32 %v818, %v1020
        %v1023 = vmul.f32 %v1021, %v1021
        %v1024 = vmul.f32 %v1022, %v1022
        %v1025 = vsel %vm390, %v1023, 0.0
        %v1026 = vsel %vm390, %v1024, 0.0
        %v1027 = vadd.f32 %v1025, %v1026
        %v1028 = vrot.slane %v1027, 4
        %v1029 = vadd.f32 %v1027, %v1028
        %v1030 = vrot.slane %v1029, 2
        %v1031 = vadd.f32 %v1029, %v1030
        %v1032 = vrot.slane %v1031, 1
        %v1033 = vadd.f32 %v1031, %v1032
        %v1034 = vmul.f32 %v1033, 0.06666667
        %v1035 = vrsqrt.pop %v1034
        %v1036 = vmul.f32 %v1035, %v1034
        %v1037 = vmul.f32 %v1036, %v1035
        %v1038 = vmul.f32 0.5, %v1037
        %v1039 = vsub.f32 1.5, %v1038
        %v1040 = vmul.f32 %v1035, %v1039
        %v1041 = vmul.f32 %v1034, %v1040
        %vm1042 = vcmp.eq.f32.partialorder %v1034, inf
        %v1043 = vsel %vm1042, %v1034, %v1041
        %vm1044 = vcmp.eq.f32.partialorder %v1034, 0.0
        %v1045 = vand.u32 %v1034, 2147483648
        %v1046 = vsel %vm1044, %v1045, %v1043
        %v1047 = vmax.f32 %v1046, 1e-08
        %v1048 = vrcp.pop %v1047
        %v1049 = vmul.f32 %v1047, %v1048
        %v1050 = vsub.f32 1.0, %v1049
        %v1051 = vmul.f32 %v1048, %v1050
        %v1052 = vadd.f32 %v1048, %v1051
        %vm1053 = vweird.f32 %v1047
        %vm1054 = vweird.f32 %v1048
        %vm1055 = vmor %vm1053, %vm1054
        %v1056 = vsel %vm1055, %v1048, %v1052
        %v1057 = vand.u32 2147483647, %v1047
        %vm1058 = vcmp.eq.f32.partialorder %v1057, 8.507059e+37
        %v1059 = vand.u32 %v1047, 2147483648
        %v1060 = vor.u32 1.1754944e-38, %v1059
        %v1061 = vsel %vm1058, %v1060, %v1056
        %v1062 = vmul.f32 %v1021, %v1061
        %v1063 = vmul.f32 %v1022, %v1061
        %1066 = vrot.lane.b32.xlu0 %v1062, 36
        %v1067 = vpop.permute.xlu0 %1066
        %1068 = vrot.lane.b32.xlu0 %v1063, 36
        %v1069 = vpop.permute.xlu0 %1068
        %vm1072 = vcmask 326944
        %1073 = vst.msk [vmem:[#allocation2] sm:$0xff] %vm1072, %v1067
        %1074 = vst.msk [vmem:[#allocation2 + $0x8] sm:$0xff] %vm1072, %v1069
        %v1075 = vsel %vm390, %v773, 0.0
        %v1076 = vsel %vm390, %v774, 0.0
        %v1077 = vadd.f32 %v1075, %v1076
        %v1078 = vrot.slane %v1077, 4
        %v1079 = vadd.f32 %v1077, %v1078
        %v1080 = vrot.slane %v1079, 2
        %v1081 = vadd.f32 %v1079, %v1080
        %v1082 = vrot.slane %v1081, 1
        %v1083 = vadd.f32 %v1081, %v1082
        %v1084 = vmul.f32 %v1083, %v406
        %v1085 = vsub.f32 %v773, %v1084
        %v1086 = vsub.f32 %v774, %v1084
        %v1087 = vmul.f32 %v1085, %v1085
        %v1088 = vmul.f32 %v1086, %v1086
        %v1089 = vsel %vm390, %v1087, 0.0
        %v1090 = vsel %vm390, %v1088, 0.0
        %v1091 = vadd.f32 %v1089, %v1090
        %v1092 = vrot.slane %v1091, 4
        %v1093 = vadd.f32 %v1091, %v1092
        %v1094 = vrot.slane %v1093, 2
        %v1095 = vadd.f32 %v1093, %v1094
        %v1096 = vrot.slane %v1095, 1
        %v1097 = vadd.f32 %v1095, %v1096
        %v1098 = vmul.f32 %v1097, 0.06666667
        %v1099 = vrsqrt.pop %v1098
        %v1100 = vmul.f32 %v1099, %v1098
        %v1101 = vmul.f32 %v1100, %v1099
        %v1102 = vmul.f32 0.5, %v1101
        %v1103 = vsub.f32 1.5, %v1102
        %v1104 = vmul.f32 %v1099, %v1103
        %v1105 = vmul.f32 %v1098, %v1104
        %vm1106 = vcmp.eq.f32.partialorder %v1098, inf
        %v1107 = vsel %vm1106, %v1098, %v1105
        %vm1108 = vcmp.eq.f32.partialorder %v1098, 0.0
        %v1109 = vand.u32 %v1098, 2147483648
        %v1110 = vsel %vm1108, %v1109, %v1107
        %v1111 = vmax.f32 %v1110, 1e-08
        %v1112 = vrcp.pop %v1111
        %v1113 = vmul.f32 %v1111, %v1112
        %v1114 = vsub.f32 1.0, %v1113
        %v1115 = vmul.f32 %v1112, %v1114
        %v1116 = vadd.f32 %v1112, %v1115
        %vm1117 = vweird.f32 %v1111
        %vm1118 = vweird.f32 %v1112
        %vm1119 = vmor %vm1117, %vm1118
        %v1120 = vsel %vm1119, %v1112, %v1116
        %v1121 = vand.u32 2147483647, %v1111
        %vm1122 = vcmp.eq.f32.partialorder %v1121, 8.507059e+37
        %v1123 = vand.u32 %v1111, 2147483648
        %v1124 = vor.u32 1.1754944e-38, %v1123
        %v1125 = vsel %vm1122, %v1124, %v1120
        %v1126 = vmul.f32 %v1085, %v1125
        %v1127 = vmul.f32 %v1086, %v1125
        %1130 = vrot.lane.b32.xlu0 %v1126, 40
        %v1131 = vpop.permute.xlu0 %1130
        %1132 = vrot.lane.b32.xlu0 %v1127, 40
        %v1133 = vpop.permute.xlu0 %1132
        %vm1136 = vcmask 359744
        %1137 = vst.msk [vmem:[#allocation2] sm:$0xff] %vm1136, %v1131
        %1138 = vst.msk [vmem:[#allocation2 + $0x8] sm:$0xff] %vm1136, %v1133
        %v1139 = vsel %vm390, %v775, 0.0
        %v1140 = vsel %vm390, %v776, 0.0
        %v1141 = vadd.f32 %v1139, %v1140
        %v1142 = vrot.slane %v1141, 4
        %v1143 = vadd.f32 %v1141, %v1142
        %v1144 = vrot.slane %v1143, 2
        %v1145 = vadd.f32 %v1143, %v1144
        %v1146 = vrot.slane %v1145, 1
        %v1147 = vadd.f32 %v1145, %v1146
        %v1148 = vmul.f32 %v1147, %v406
        %v1149 = vsub.f32 %v775, %v1148
        %v1150 = vsub.f32 %v776, %v1148
        %v1151 = vmul.f32 %v1149, %v1149
        %v1152 = vmul.f32 %v1150, %v1150
        %v1153 = vsel %vm390, %v1151, 0.0
        %v1154 = vsel %vm390, %v1152, 0.0
        %v1155 = vadd.f32 %v1153, %v1154
        %v1156 = vrot.slane %v1155, 4
        %v1157 = vadd.f32 %v1155, %v1156
        %v1158 = vrot.slane %v1157, 2
        %v1159 = vadd.f32 %v1157, %v1158
        %v1160 = vrot.slane %v1159, 1
        %v1161 = vadd.f32 %v1159, %v1160
        %v1162 = vmul.f32 %v1161, 0.06666667
        %v1163 = vrsqrt.pop %v1162
        %v1164 = vmul.f32 %v1163, %v1162
        %v1165 = vmul.f32 %v1164, %v1163
        %v1166 = vmul.f32 0.5, %v1165
        %v1167 = vsub.f32 1.5, %v1166
        %v1168 = vmul.f32 %v1163, %v1167
        %v1169 = vmul.f32 %v1162, %v1168
        %vm1170 = vcmp.eq.f32.partialorder %v1162, inf
        %v1171 = vsel %vm1170, %v1162, %v1169
        %vm1172 = vcmp.eq.f32.partialorder %v1162, 0.0
        %v1173 = vand.u32 %v1162, 2147483648
        %v1174 = vsel %vm1172, %v1173, %v1171
        %v1175 = vmax.f32 %v1174, 1e-08
        %v1176 = vrcp.pop %v1175
        %v1177 = vmul.f32 %v1175, %v1176
        %v1178 = vsub.f32 1.0, %v1177
        %v1179 = vmul.f32 %v1176, %v1178
        %v1180 = vadd.f32 %v1176, %v1179
        %vm1181 = vweird.f32 %v1175
        %vm1182 = vweird.f32 %v1176
        %vm1183 = vmor %vm1181, %vm1182
        %v1184 = vsel %vm1183, %v1176, %v1180
        %v1185 = vand.u32 2147483647, %v1175
        %vm1186 = vcmp.eq.f32.partialorder %v1185, 8.507059e+37
        %v1187 = vand.u32 %v1175, 2147483648
        %v1188 = vor.u32 1.1754944e-38, %v1187
        %v1189 = vsel %vm1186, %v1188, %v1184
        %v1190 = vmul.f32 %v1149, %v1189
        %v1191 = vmul.f32 %v1150, %v1189
        %1194 = vrot.lane.b32.xlu0 %v1190, 44
        %v1195 = vpop.permute.xlu0 %1194
        %1196 = vrot.lane.b32.xlu0 %v1191, 44
        %v1197 = vpop.permute.xlu0 %1196
        %vm1200 = vcmask 392544
        %1201 = vst.msk [vmem:[#allocation2] sm:$0xff] %vm1200, %v1195
        %1202 = vst.msk [vmem:[#allocation2 + $0x8] sm:$0xff] %vm1200, %v1197
        %v1203 = vld [vmem:[%s343] sm:$0xff]
        %v1204 = vld [vmem:[%s343 + $0x8] sm:$0xff]
        %1207 = vrot.lane.b32.xlu0 %v1203, 48
        %v1208 = vpop.permute.xlu0 %1207
        %1209 = vrot.lane.b32.xlu0 %v1204, 48
        %v1210 = vpop.permute.xlu0 %1209
        %vm1213 = vcmask 523648
        %1214 = vst.msk [vmem:[#allocation2] sm:$0xff] %vm1213, %v1208
        %1215 = vst.msk [vmem:[#allocation2 + $0x8] sm:$0xff] %vm1213, %v1210
        %v1216 = vld [vmem:[#allocation2] sm:$0xff]
        %v1217 = vld [vmem:[#allocation2 + $0x8] sm:$0xff]
        %vm1218 = vcmask 523264
        %v1219 = vsel %vm1218, %v1216, 0.0
        %v1220 = vsel %vm1218, %v1217, 0.0
        %v1221 = vadd.f32 %v1219, %v1220
        %v1222 = vrot.slane %v1221, 4
        %v1223 = vadd.f32 %v1221, %v1222
        %v1224 = vrot.slane %v1223, 2
        %v1225 = vadd.f32 %v1223, %v1224
        %v1226 = vrot.slane %v1225, 1
        %v1227 = vadd.f32 %v1225, %v1226
        %v1228 = vmul.f32 %v1227, %v406
        %v1229 = vsub.f32 %v1216, %v1228
        %v1230 = vsub.f32 %v1217, %v1228
        %v1231 = vmul.f32 %v1229, %v1229
        %v1232 = vmul.f32 %v1230, %v1230
        %v1233 = vsel %vm1218, %v1231, 0.0
        %v1234 = vsel %vm1218, %v1232, 0.0
        %v1235 = vadd.f32 %v1233, %v1234
        %v1236 = vrot.slane %v1235, 4
        %v1237 = vadd.f32 %v1235, %v1236
        %v1238 = vrot.slane %v1237, 2
        %v1239 = vadd.f32 %v1237, %v1238
        %v1240 = vrot.slane %v1239, 1
        %v1241 = vadd.f32 %v1239, %v1240
        %v1242 = vmul.f32 %v1241, %v406
        %v1243 = vadd.f32 %v1242, 1e-05
        %v1244 = vrsqrt.pop %v1243
        %v1245 = vmul.f32 %v1244, %v1243
        %v1246 = vmul.f32 %v1245, %v1244
        %v1247 = vmul.f32 0.5, %v1246
        %v1248 = vsub.f32 1.5, %v1247
        %v1249 = vmul.f32 %v1244, %v1248
        %vm1250 = vweird.f32 %v1243
        %vm1251 = vweird.f32 %v1244
        %vm1252 = vmor %vm1250, %vm1251
        %v1253 = vsel %vm1252, %v1244, %v1249
        %v1254 = vld [vmem:[%s3] sm:$0x1]
        %v1255 = vmul.f32 %v1253, %v1254
        %v1256 = vperm.slane %v1255, 0
        %v1257 = vmul.f32 %v1229, %v1256
        %v1258 = vmul.f32 %v1230, %v1256
        %v1259 = vld [vmem:[%s4] sm:$0x1]
        %v1261 = vperm.slane %v1259, 0
        %v1263 = vadd.f32 %v1257, %v1261
        %v1264 = vadd.f32 %v1258, %v1261
        %v1265 = vld [vmem:[%s5] sm:$0xff]
        %v1266 = vld [vmem:[%s5 + $0x8] sm:$0xff]
        %v1267 = vld [vmem:[%s5 + $0x10] sm:$0xff]
        %v1268 = vld [vmem:[%s5 + $0x18] sm:$0xff]
        %v1269 = vld [vmem:[%s5 + $0x20] sm:$0xff]
        %v1270 = vld [vmem:[%s5 + $0x28] sm:$0xff]
        %v1271 = vld [vmem:[%s5 + $0x30] sm:$0xff]
        %v1272 = vld [vmem:[%s5 + $0x38] sm:$0xff]
        %v1273 = vld [vmem:[%s6] sm:$0x1]
        %v1275 = vperm.slane %v1273, 0
        %v1278 = vsel %vm1218, %v1263, 0
        %v1281 = vsel %vm1218, %v1264, 0
        %1283 = vmatpush.msra.mxu0 0.0
        %1284 = vmatpush.msra.mxu0 0.0
        %1285 = vmatpush.msra.mxu0 0.0
        %1286 = vmatpush.msra.mxu0 0.0
        %1287 = vmatpush.msra.mxu0 0.0
        %1288 = vmatpush.msra.mxu0 0.0
        %1289 = vmatpush.msra.mxu0 0.0
        %1290 = vmatpush.msra.mxu0 0.0
        %1291 = vmatpush.msra.mxu0 %v1272
        %1292 = vmatpush.msra.mxu0 %v1271
        %1293 = vmatpush.msra.mxu0 %v1270
        %1294 = vmatpush.msra.mxu0 %v1269
        %1295 = vmatpush.msra.mxu0 %v1268
        %1296 = vmatpush.msra.mxu0 %v1267
        %1297 = vmatpush.msra.mxu0 %v1266
        %1298 = vmatpush.msra.mxu0 %v1265
        %1299 = vmatmul.f32.gmra.mxu0 %v1278
        %v1300 = vpop.f32.mrf.mxu0
        %v1301 = vadd.f32 %v1275, %v1300
        %1302 = vmatmul.f32.gmra.mxu0 %v1281
        %v1303 = vpop.f32.mrf.mxu0
        %v1304 = vadd.f32 %v1275, %v1303
        %1305 = vdwg.mxu0
        %v1306 = vld [vmem:[%s7] sm:$0x3]
        %1309 = vrot.lane.b32.xlu0 %v1301, 112
        %v1310 = vpop.permute.xlu0 %1309
        %1311 = vrot.lane.b32.xlu0 %v1304, 112
        %v1312 = vpop.permute.xlu0 %1311
        %v1315 = vmul.f32 %v1301, %v1310
        %v1316 = vmul.f32 %v1304, %v1312
        %vm1317 = vcmask 130048
        %v1319 = vsel %vm1317, %v1306, 0
        %1321 = vmatpush.msra.mxu0 0.0
        %1322 = vmatpush.msra.mxu0 0.0
        %1323 = vmatpush.msra.mxu0 0.0
        %1324 = vmatpush.msra.mxu0 0.0
        %1325 = vmatpush.msra.mxu0 0.0
        %1326 = vmatpush.msra.mxu0 0.0
        %1327 = vmatpush.msra.mxu0 0.0
        %1328 = vmatpush.msra.mxu0 0.0
        %1329 = vmatpush.msra.mxu0 0.0
        %1330 = vmatpush.msra.mxu0 0.0
        %1331 = vmatpush.msra.mxu0 0.0
        %1332 = vmatpush.msra.mxu0 0.0
        %1333 = vmatpush.msra.mxu0 0.0
        %1334 = vmatpush.msra.mxu0 0.0
        %1335 = vmatpush.msra.mxu0 %v1316
        %1336 = vmatpush.msra.mxu0 %v1315
        %1337 = vmatmul.f32.gmra.mxu0 %v1319
        %v1338 = vpop.f32.mrf.mxu0
        %v1339 = vadd.f32 0.0, %v1338
        %1340 = vdwg.mxu0
        %v1341 = vmul.f32 %v1301, %v1301
        %v1342 = vmul.f32 %v1304, %v1304
        %1343 = vmatpush.msra.mxu0 0.0
        %1344 = vmatpush.msra.mxu0 0.0
        %1345 = vmatpush.msra.mxu0 0.0
        %1346 = vmatpush.msra.mxu0 0.0
        %1347 = vmatpush.msra.mxu0 0.0
        %1348 = vmatpush.msra.mxu0 0.0
        %1349 = vmatpush.msra.mxu0 0.0
        %1350 = vmatpush.msra.mxu0 0.0
        %1351 = vmatpush.msra.mxu0 0.0
        %1352 = vmatpush.msra.mxu0 0.0
        %1353 = vmatpush.msra.mxu0 0.0
        %1354 = vmatpush.msra.mxu0 0.0
        %1355 = vmatpush.msra.mxu0 0.0
        %1356 = vmatpush.msra.mxu0 0.0
        %1357 = vmatpush.msra.mxu0 %v1342
        %1358 = vmatpush.msra.mxu0 %v1341
        %1359 = vmatmul.f32.gmra.mxu0 %v1319
        %v1360 = vpop.f32.mrf.mxu0
        %v1361 = vadd.f32 0.0, %v1360
        %1362 = vdwg.mxu0
        %1365 = vrot.lane.b32.xlu0 %v1341, 112
        %v1366 = vpop.permute.xlu0 %1365
        %1367 = vrot.lane.b32.xlu0 %v1342, 112
        %v1368 = vpop.permute.xlu0 %1367
        %1371 = vmatpush.msra.mxu0 0.0
        %1372 = vmatpush.msra.mxu0 0.0
        %1373 = vmatpush.msra.mxu0 0.0
        %1374 = vmatpush.msra.mxu0 0.0
        %1375 = vmatpush.msra.mxu0 0.0
        %1376 = vmatpush.msra.mxu0 0.0
        %1377 = vmatpush.msra.mxu0 0.0
        %1378 = vmatpush.msra.mxu0 0.0
        %1379 = vmatpush.msra.mxu0 0.0
        %1380 = vmatpush.msra.mxu0 0.0
        %1381 = vmatpush.msra.mxu0 0.0
        %1382 = vmatpush.msra.mxu0 0.0
        %1383 = vmatpush.msra.mxu0 0.0
        %1384 = vmatpush.msra.mxu0 0.0
        %1385 = vmatpush.msra.mxu0 %v1368
        %1386 = vmatpush.msra.mxu0 %v1366
        %1387 = vmatmul.f32.gmra.mxu0 %v1319
        %v1388 = vpop.f32.mrf.mxu0
        %v1389 = vadd.f32 0.0, %v1388
        %1390 = vdwg.mxu0
        %v1391 = vmul.f32 %v1361, %v1389
        %v1392 = vmax.f32 %v1391, 1e-16
        %v1393 = vrsqrt.pop %v1392
        %v1394 = vmul.f32 %v1393, %v1392
        %v1395 = vmul.f32 %v1394, %v1393
        %v1396 = vmul.f32 0.5, %v1395
        %v1397 = vsub.f32 1.5, %v1396
        %v1398 = vmul.f32 %v1393, %v1397
        %vm1399 = vweird.f32 %v1392
        %vm1400 = vweird.f32 %v1393
        %vm1401 = vmor %vm1399, %vm1400
        %v1402 = vsel %vm1401, %v1393, %v1398
        %v1403 = vmul.f32 %v1339, %v1402
        %vm1404 = vcmask 123904
        %1405 = vst.msk [vmem:[%s328] sm:$0x3] %vm1404, %v1403
        %s1406 = sand.u32 %s213, 1
        %s1407 = scalar_lea.sflag [#allocation4], %s1406
        %s1408 = sand.u32 %s213, 1
        %s1409 = smul.addr %s1408, 2
        %s1410 = scalar_lea.vmem [#allocation3], %s1409
        // Predicated region
        $region53: #{tpu_custom_call.1} parent=51 // pred_check
          %p1411 = pneg %p223
        $region54: #{tpu_custom_call.1} parent=51 // pred_check_branch
          %1413 = sbr.rel (%p1411) target = $region56
        $region55: #{tpu_custom_call.1} parent=51 // pred_region
          %1415 = vsyncadd %s1407, 0
          %s1416 = smul.addr %s22, 2
          %s1417 = scalar_lea.hbm %s8, %s1416
          %s1419 = sshll.u32 %s1410, 4
          %s1420 = int_to_ptr.vmem [resolvable:$true] %s1419
          %s1421 = sshll.u32 %s1417, 4
          %s1422 = int_to_ptr.hbm [resolvable:$true] %s1421
          %1424 = dma.vmem_to_hbm [thread:$0]  %s1420, 32, %s1422, %s1407
        $region56: #{tpu_custom_call.1} parent=51 // pred_fallthru
          _
      $region52: #{tpu_custom_call.1} parent=5 // pred_fallthru
        _
      %p1425 = scmp.le.s32.totalorder 2, %s17
      // Predicated region
      $region57: #{tpu_custom_call.1} parent=5 // pred_check
        %p1426 = pneg %p1425
      $region58: #{tpu_custom_call.1} parent=5 // pred_check_branch
        %1428 = sbr.rel (%p1426) target = $region60
      $region59: #{tpu_custom_call.1} parent=5 // pred_region
        %s1429 = ssub.s32 %s17, 2
        // Predicated region
        $region61: #{tpu_custom_call.1} parent=59 // pred_check
          %p1430 = pneg %p229
        $region62: #{tpu_custom_call.1} parent=59 // pred_check_branch
          %1432 = sbr.rel (%p1430) target = $region64
        $region63: #{tpu_custom_call.1} parent=59 // pred_region
          %s1433 = sand.u32 %s214, 1
          %s1434 = scalar_lea.sflag [#allocation4], %s1433
          %s1435 = sand.u32 %s214, 1
          %s1436 = smul.addr %s1435, 2
          %s1437 = scalar_lea.vmem [#allocation3], %s1436
          %1439 = dma.done %s1434, 32
        $region64: #{tpu_custom_call.1} parent=59 // pred_fallthru
          _
      $region60: #{tpu_custom_call.1} parent=5 // pred_fallthru
        _
    $region6: #{tpu_custom_call.1} parent=1 // loop_footer
      %s21 = sadd.s32 1, %s17
    $region7: #{tpu_custom_call.1} parent=1 // loop_footer_branch
      %16 = sbr.rel target = $region3
    $region8: #{tpu_custom_call.1} parent=1 // loop_exit
      _
    %1440 = vsyncpa [#allocation4], 1
    %s1441 = scalar_lea.sflag [#allocation4], 1
    %1442 = vsyncpa %s1441, 1

</llo_original>
